<compile_context>
chip_gen: v7x
topology: tpu7x:2x2x1
jax: 0.10.0
libtpu: 0.0.40
codegen_flags: <defaults>
</compile_context>

<pallas_src>
import functools

import jax
import jax.numpy as jnp
from jax.experimental import pallas as pl
from jax.experimental.pallas import tpu as pltpu


def _round_up(v, m):
    return ((v + m - 1) // m) * m


def _pick_vmem_limit():
    """Generation-aware scoped-VMEM limit (safe fallback: 32 MiB, fine on v5e/v6e/v7x)."""
    limit = 32 * 1024 * 1024
    try:
        cap = int(pltpu.get_tpu_info().vmem_capacity_bytes)
        if 16 * 1024 * 1024 <= cap <= 512 * 1024 * 1024:
            # Use at most half of physical VMEM, capped at 64 MiB (extra headroom on
            # v5e/v6e's 128 MiB; never oversubscribes v7x's 64 MiB per TensorCore).
            limit = max(32 * 1024 * 1024, min(64 * 1024 * 1024, cap // 2))
    except Exception:
        pass
    return limit


def cbam_kernel(x_ref, w1t_ref, w2t_ref, wsp_ref, o_ref, pad_ref,
                *, H, W, K, PAD, base):
    """One grid step: Nb full samples, fully fused in VMEM.

    x_ref  : (Nb, C, H*W)   input block (lane-dense)
    w1t_ref: (C, Crp)       f1 weight, transposed + lane-padded in the wrapper
    w2t_ref: (Crp, C)       f2 weight, transposed + lane-padded in the wrapper
    wsp_ref: (2*K*K,)       spatial conv weights, SMEM scalars
    o_ref  : (Nb, C, H*W)   output block
    pad_ref: (2*Nb, Lpad)   flat zero-guarded scratch for the spatial conv
    """
    HW = H * W
    x = x_ref[...].astype(jnp.float32)                 # (Nb, C, HW)
    Nb = x.shape[0]

    # ---------------- Channel attention ----------------
    avg = jnp.mean(x, axis=2)                          # (Nb, C)  lane reduce per row
    mx = jnp.max(x, axis=2)                            # (Nb, C)
    pooled = jnp.concatenate([avg, mx], axis=0)        # (2*Nb, C)
    w1t = w1t_ref[...].astype(jnp.float32)             # (C, Crp)  lane-dense
    w2t = w2t_ref[...].astype(jnp.float32)             # (Crp, C)
    # Shared 1x1-conv MLP on avg & max pooled vectors in one batched matmul pair.
    hid = jnp.maximum(jnp.dot(pooled, w1t, preferred_element_type=jnp.float32), 0.0)
    att = jnp.dot(hid, w2t, preferred_element_type=jnp.float32)   # (2*Nb, C)
    ca = jax.nn.sigmoid(att[:Nb] + att[Nb:])           # (Nb, C)
    y = x * ca[:, :, None]                             # (Nb, C, HW)  lane-dense

    # ---------------- Spatial attention ----------------
    avg_map = jnp.mean(y, axis=1)                      # (Nb, HW)  sublane reduce
    max_map = jnp.max(y, axis=1)                       # (Nb, HW)

    # Zero only the guard columns (interior [base, base+HW) is fully overwritten below).
    # NOTE: done every step (not program_id-gated) so each TensorCore's private scratch
    # is initialized under dimension_semantics=("parallel",).
    pad_ref[:, :base] = jnp.zeros((2 * Nb, base), jnp.float32)
    tail = pad_ref.shape[1] - (base + HW)
    if tail > 0:
        pad_ref[:, base + HW:] = jnp.zeros((2 * Nb, tail), jnp.float32)
    # Store the pooled maps directly into the scratch rows (no concat copy).
    pad_ref[:Nb, base:base + HW] = avg_map
    pad_ref[Nb:, base:base + HW] = max_map

    # Column index of every flattened pixel (masks horizontal out-of-range taps).
    col = jax.lax.broadcasted_iota(jnp.int32, (1, HW), 1) % W

    # Hoist all 2*K*K SMEM scalar weight reads out of the unrolled tap loop.
    w_taps = [wsp_ref[i] for i in range(2 * K * K)]

    # Independent partial accumulators break the 49-long serial add chain (VPU ILP).
    num_acc = 4
    parts = [jnp.zeros((Nb, HW), jnp.float32) for _ in range(num_acc)]
    for kw in range(K):
        d = kw - PAD
        mask = jnp.logical_and(col + d >= 0, col + d < W).astype(jnp.float32)  # (1, HW)
        for kh in range(K):
            off = base + (kh - PAD) * W + d            # static, >= 0 by construction
            tap = pad_ref[:, off:off + HW]             # (2*Nb, HW): one slice, both chans
            contrib = (tap[:Nb] * w_taps[kh * K + kw]
                       + tap[Nb:] * w_taps[K * K + kh * K + kw])
            idx = (kw * K + kh) % num_acc
            parts[idx] = parts[idx] + contrib * mask
    conv = parts[0]
    for p in parts[1:]:
        conv = conv + p
    sa = jax.nn.sigmoid(conv)                          # (Nb, HW)

    o_ref[...] = (y * sa[:, None, :]).astype(o_ref.dtype)


def cbam_pallas(x, w1, w2, wsp_flat, *, block_n=None):
    """CBAM forward. x: (N, C, H, W); w1: (C//r, C); w2: (C, C//r); wsp_flat: (2*K*K,)."""
    N, C, H, W = x.shape
    Cr = w1.shape[0]
    K = int(round((wsp_flat.shape[0] // 2) ** 0.5))
    assert 2 * K * K == wsp_flat.shape[0]
    PAD = (K - 1) // 2
    HW = H * W

    # Lane-dense input view.
    x2 = x.reshape(N, C, HW)

    # Transposed MLP weights, zero-padded so the hidden dim fills a full 128-lane vreg.
    # Numerically identical: relu(pooled @ 0) = 0 and the padded zero rows of w2t
    # contribute nothing to the second dot.
    Crp = max(128, _round_up(Cr, 128))
    w1t = jnp.zeros((C, Crp), w1.dtype).at[:, :Cr].set(jnp.transpose(w1))
    w2t = jnp.zeros((Crp, C), w2.dtype).at[:Cr, :].set(jnp.transpose(w2))

    # Flat padded scratch geometry for the KxK conv (see kernel docstring).
    guard = PAD * W + PAD                        # room for the most-negative tap offset
    base = _round_up(guard, 128)                 # 128-aligned interior write
    Lpad = _round_up(base + HW + guard, 128)

    vmem_limit = _pick_vmem_limit()

    if block_n is None:
        itemsize = jnp.dtype(x.dtype).itemsize
        # Per-sample VMEM footprint: double-buffered input + output blocks at native
        # dtype, ~3 f32 temporaries (x, y, final product), and the conv pad scratch.
        per_sample = (4 * C * HW * itemsize) + (3 * C * HW * 4) + (2 * Lpad * 4)
        budget = vmem_limit // 2
        cap = max(1, budget // max(per_sample, 1))
        if N >= 2:
            # Keep at least 2 grid steps so v7x's second TensorCore gets work.
            cap = min(cap, max(1, N // 2))
        cap = min(cap, N)
        if cap >= 4:
            # 2*Nb multiple of 8 -> the (2*Nb, Lpad) conv scratch fills all 8 sublanes.
            block_n = (cap // 4) * 4
        else:
            block_n = cap
    Nb = block_n

    # Pad the batch so the grid covers it exactly; padded samples compute independent
    # throwaway results that are sliced off below (no masking needed).
    Npad = _round_up(N, Nb)
    if Npad != N:
        x2 = jnp.pad(x2, ((0, Npad - N), (0, 0), (0, 0)))

    kernel = functools.partial(cbam_kernel, H=H, W=W, K=K, PAD=PAD, base=base)

    out = pl.pallas_call(
        kernel,
        out_shape=jax.ShapeDtypeStruct((Npad, C, HW), x.dtype),
        grid_spec=pltpu.PrefetchScalarGridSpec(
            num_scalar_prefetch=0,
            grid=(Npad // Nb,),
            in_specs=[
                # (C, HW) are full array dims, so the (8,128) block rule holds for any
                # C/H/W; HW lane-dense (multiple of 128) for typical spatial sizes.
                pl.BlockSpec((Nb, C, HW), lambda n: (n, 0, 0)),
                pl.BlockSpec((C, Crp), lambda n: (0, 0)),
                pl.BlockSpec((Crp, C), lambda n: (0, 0)),
                pl.BlockSpec(memory_space=pltpu.MemorySpace.SMEM),
            ],
            out_specs=pl.BlockSpec((Nb, C, HW), lambda n: (n, 0, 0)),
            scratch_shapes=[pltpu.VMEM((2 * Nb, Lpad), jnp.float32)],
        ),
        compiler_params=pltpu.CompilerParams(
            # Batch blocks are independent -> megacore-shardable on v7x; no-op on v5e/v6e.
            dimension_semantics=("parallel",),
            vmem_limit_bytes=vmem_limit,
        ),
    )(x2, w1t, w2t, wsp_flat)
    out = out[:N]
    return out.reshape(N, C, H, W)


def cbam_ref(x, w1, w2, wsp_flat):
    """Pure-JAX reference matching the PyTorch CBAM forward."""
    avg = jnp.mean(x, axis=(2, 3))
    mx = jnp.max(x, axis=(2, 3))

    def mlp(p):
        h = jnp.maximum(p @ w1.T, 0.0)
        return h @ w2.T

    ca = jax.nn.sigmoid(mlp(avg) + mlp(mx))                  # (N, C)
    y = x * ca[:, :, None, None]
    avg_map = jnp.mean(y, axis=1, keepdims=True)
    max_map = jnp.max(y, axis=1, keepdims=True)
    sp_in = jnp.concatenate([avg_map, max_map], axis=1)      # (N, 2, H, W)
    K = int(round((wsp_flat.shape[0] // 2) ** 0.5))
    pad = (K - 1) // 2
    wconv = wsp_flat.reshape(1, 2, K, K)
    conv = jax.lax.conv_general_dilated(
        sp_in, wconv, window_strides=(1, 1), padding=((pad, pad), (pad, pad)),
        dimension_numbers=("NCHW", "OIHW", "NCHW"))
    sa = jax.nn.sigmoid(conv)
    return y * sa


if __name__ == "__main__":
    key = jax.random.PRNGKey(0)
    kx, k1, k2, k3 = jax.random.split(key, 4)

    # Module config: CBAM(c1=32, ratio=16, kernel_size=7)
    N, C, H, W = 2, 32, 16, 16
    ratio, K = 16, 7
    Cr = C // ratio

    x = jax.random.normal(kx, (N, C, H, W), jnp.float32)
    # Deterministic synthetic parameters (shapes match the nn.Conv2d weights).
    w1 = jax.random.normal(k1, (Cr, C), jnp.float32) * (1.0 / jnp.sqrt(C))        # f1: (C/r, C, 1, 1)
    w2 = jax.random.normal(k2, (C, Cr), jnp.float32) * (1.0 / jnp.sqrt(Cr))       # f2: (C, C/r, 1, 1)
    wsp = jax.random.normal(k3, (2 * K * K,), jnp.float32) * (1.0 / jnp.sqrt(2.0 * K * K))  # (1,2,7,7) flat

    out = jax.block_until_ready(cbam_pallas(x, w1, w2, wsp))
    ref = cbam_ref(x, w1, w2, wsp)

    assert out.shape == (N, C, H, W)
    err = float(jnp.max(jnp.abs(out - ref)))
    assert jnp.allclose(out, ref, rtol=1e-4, atol=1e-4), f"max abs err = {err}"
    print("KERNEL_OK")
</pallas_src>

<mosaic_0001>
module attributes {stable_mosaic.version = 11 : i64} {
  func.func @cbam_kernel(%arg0: i32, %arg1: memref<1x32x256xf32, #tpu.memory_space<vmem>>, %arg2: memref<32x128xf32, #tpu.memory_space<vmem>>, %arg3: memref<128x32xf32, #tpu.memory_space<vmem>>, %arg4: memref<98xf32, #tpu.memory_space<smem>>, %arg5: memref<1x32x256xf32, #tpu.memory_space<vmem>>, %arg6: memref<2x512xf32, #tpu.memory_space<vmem>>) attributes {dimension_semantics = [#tpu.dimension_semantics<parallel>], iteration_bounds = array<i64: 2>, scalar_prefetch = 0 : i64, scratch_operands = 1 : i64, tpu.core_type = #tpu.core_type<tc>, window_params = [{transform_indices = @transform_0, window_bounds = array<i64: 1, 32, 256>}, {pipeline_mode = #tpu.pipeline_mode<synchronous>, transform_indices = @transform_1, window_bounds = array<i64: 32, 128>}, {pipeline_mode = #tpu.pipeline_mode<synchronous>, transform_indices = @transform_2, window_bounds = array<i64: 128, 32>}, {transform_indices = @transform_3, window_bounds = array<i64: 98>}, {transform_indices = @transform_4, window_bounds = array<i64: 1, 32, 256>}]} {
    %c0 = arith.constant 0 : index
    %c0_0 = arith.constant 0 : index
    %c0_1 = arith.constant 0 : index
    %0 = vector.load %arg1[%c0, %c0_0, %c0_1] : memref<1x32x256xf32, #tpu.memory_space<vmem>>, vector<1x32x256xf32>
    %cst = arith.constant dense<0.000000e+00> : vector<1x32xf32>
    %1 = vector.multi_reduction <add>, %0, %cst [2] : vector<1x32x256xf32> to vector<1x32xf32>
    %cst_2 = arith.constant 2.560000e+02 : f32
    %2 = vector.broadcast %cst_2 : f32 to vector<1x32xf32>
    %3 = arith.divf %1, %2 : vector<1x32xf32>
    %cst_3 = arith.constant dense<0xFF800000> : vector<1x32xf32>
    %4 = vector.multi_reduction <maximumf>, %0, %cst_3 [2] : vector<1x32x256xf32> to vector<1x32xf32>
    %5 = tpu.concatenate %3, %4 in 0 : vector<1x32xf32>, vector<1x32xf32> -> vector<2x32xf32>
    %c0_4 = arith.constant 0 : index
    %c0_5 = arith.constant 0 : index
    %6 = vector.load %arg2[%c0_4, %c0_5] : memref<32x128xf32, #tpu.memory_space<vmem>>, vector<32x128xf32>
    %c0_6 = arith.constant 0 : index
    %c0_7 = arith.constant 0 : index
    %7 = vector.load %arg3[%c0_6, %c0_7] : memref<128x32xf32, #tpu.memory_space<vmem>>, vector<128x32xf32>
    %cst_8 = arith.constant dense<0.000000e+00> : vector<2x128xf32>
    %8 = tpu.matmul %5, %6, %cst_8 {dimension_numbers = #tpu.dot_dimension_numbers<[1], [0], [0], [1], [0, 0, 1, 1], [], []>} : vector<2x32xf32>, vector<32x128xf32>, vector<2x128xf32> -> vector<2x128xf32>
    %cst_9 = arith.constant 0.000000e+00 : f32
    %9 = vector.broadcast %cst_9 : f32 to vector<2x128xf32>
    %10 = arith.maximumf %8, %9 : vector<2x128xf32>
    %cst_10 = arith.constant dense<0.000000e+00> : vector<2x32xf32>
    %11 = tpu.matmul %10, %7, %cst_10 {dimension_numbers = #tpu.dot_dimension_numbers<[1], [0], [0], [1], [0, 0, 1, 1], [], []>} : vector<2x128xf32>, vector<128x32xf32>, vector<2x32xf32> -> vector<2x32xf32>
    %12 = vector.extract_strided_slice %11 {offsets = [0, 0], sizes = [1, 32], strides = [1, 1]} : vector<2x32xf32> to vector<1x32xf32>
    %13 = vector.extract_strided_slice %11 {offsets = [1, 0], sizes = [1, 32], strides = [1, 1]} : vector<2x32xf32> to vector<1x32xf32>
    %14 = arith.addf %12, %13 : vector<1x32xf32>
    %15 = arith.negf %14 : vector<1x32xf32>
    %16 = math.exp %15 : vector<1x32xf32>
    %cst_11 = arith.constant 1.000000e+00 : f32
    %17 = vector.broadcast %cst_11 : f32 to vector<1x32xf32>
    %18 = arith.addf %17, %16 : vector<1x32xf32>
    %19 = arith.divf %17, %18 : vector<1x32xf32>
    %20 = vector.shape_cast %19 : vector<1x32xf32> to vector<1x32x1xf32>
    %21 = vector.broadcast %20 : vector<1x32x1xf32> to vector<1x32x256xf32>
    %22 = arith.mulf %0, %21 : vector<1x32x256xf32>
    %cst_12 = arith.constant dense<0.000000e+00> : vector<1x256xf32>
    %23 = vector.multi_reduction <add>, %22, %cst_12 [1] : vector<1x32x256xf32> to vector<1x256xf32>
    %cst_13 = arith.constant 3.200000e+01 : f32
    %24 = vector.broadcast %cst_13 : f32 to vector<1x256xf32>
    %25 = arith.divf %23, %24 : vector<1x256xf32>
    %cst_14 = arith.constant dense<0xFF800000> : vector<1x256xf32>
    %26 = vector.multi_reduction <maximumf>, %22, %cst_14 [1] : vector<1x32x256xf32> to vector<1x256xf32>
    %cst_15 = arith.constant 0.000000e+00 : f32
    %27 = vector.broadcast %cst_15 : f32 to vector<2x128xf32>
    %c0_16 = arith.constant 0 : index
    %c0_17 = arith.constant 0 : index
    %28 = vector.load %arg6[%c0_16, %c0_17] : memref<2x512xf32, #tpu.memory_space<vmem>>, vector<2x128xf32>
    tpu.vector_store %arg6[%c0_16, %c0_17], %27 {strides = array<i32>} : memref<2x512xf32, #tpu.memory_space<vmem>>, vector<2x128xf32>,
    %cst_18 = arith.constant 0.000000e+00 : f32
    %29 = vector.broadcast %cst_18 : f32 to vector<2x128xf32>
    %c0_19 = arith.constant 0 : index
    %c384 = arith.constant 384 : index
    %30 = vector.load %arg6[%c0_19, %c384] : memref<2x512xf32, #tpu.memory_space<vmem>>, vector<2x128xf32>
    tpu.vector_store %arg6[%c0_19, %c384], %29 {strides = array<i32>} : memref<2x512xf32, #tpu.memory_space<vmem>>, vector<2x128xf32>,
    %c0_20 = arith.constant 0 : index
    %c128 = arith.constant 128 : index
    %31 = vector.load %arg6[%c0_20, %c128] : memref<2x512xf32, #tpu.memory_space<vmem>>, vector<1x256xf32>
    tpu.vector_store %arg6[%c0_20, %c128], %25 {strides = array<i32>} : memref<2x512xf32, #tpu.memory_space<vmem>>, vector<1x256xf32>,
    %c1 = arith.constant 1 : index
    %c128_21 = arith.constant 128 : index
    %32 = vector.load %arg6[%c1, %c128_21] : memref<2x512xf32, #tpu.memory_space<vmem>>, vector<1x256xf32>
    tpu.vector_store %arg6[%c1, %c128_21], %26 {strides = array<i32>} : memref<2x512xf32, #tpu.memory_space<vmem>>, vector<1x256xf32>,
    %33 = tpu.iota {dimensions = array<i32: 1>} : vector<1x256xi32>
    %c16_i32 = arith.constant 16 : i32
    %c0_i32 = arith.constant 0 : i32
    %34 = arith.cmpi eq, %c16_i32, %c0_i32 : i32
    %c1_i32 = arith.constant 1 : i32
    %35 = arith.select %34, %c1_i32, %c16_i32 : i32
    %36 = vector.broadcast %35 : i32 to vector<1x256xi32>
    %37 = arith.remsi %33, %36 : vector<1x256xi32>
    %c0_i32_22 = arith.constant 0 : i32
    %38 = vector.broadcast %c0_i32_22 : i32 to vector<1x256xi32>
    %39 = arith.cmpi ne, %37, %38 : vector<1x256xi32>
    %c0_i32_23 = arith.constant 0 : i32
    %40 = vector.broadcast %c0_i32_23 : i32 to vector<1x256xi32>
    %41 = arith.cmpi slt, %37, %40 : vector<1x256xi32>
    %c0_i32_24 = arith.constant 0 : i32
    %42 = arith.cmpi slt, %35, %c0_i32_24 : i32
    %43 = vector.broadcast %42 : i1 to vector<1x256xi1>
    %44 = vector.broadcast %43 : vector<1x256xi1> to vector<1x256xi1>
    %45 = arith.xori %41, %44 : vector<1x256xi1>
    %46 = arith.andi %45, %39 : vector<1x256xi1>
    %47 = vector.broadcast %35 : i32 to vector<1x256xi32>
    %48 = arith.addi %37, %47 : vector<1x256xi32>
    %49 = arith.select %46, %48, %37 : vector<1x256xi1>, vector<1x256xi32>
    %c0_25 = arith.constant 0 : index
    %50 = memref.load %arg4[%c0_25] : memref<98xf32, #tpu.memory_space<smem>>
    %c1_26 = arith.constant 1 : index
    %51 = memref.load %arg4[%c1_26] : memref<98xf32, #tpu.memory_space<smem>>
    %c2 = arith.constant 2 : index
    %52 = memref.load %arg4[%c2] : memref<98xf32, #tpu.memory_space<smem>>
    %c3 = arith.constant 3 : index
    %53 = memref.load %arg4[%c3] : memref<98xf32, #tpu.memory_space<smem>>
    %c4 = arith.constant 4 : index
    %54 = memref.load %arg4[%c4] : memref<98xf32, #tpu.memory_space<smem>>
    %c5 = arith.constant 5 : index
    %55 = memref.load %arg4[%c5] : memref<98xf32, #tpu.memory_space<smem>>
    %c6 = arith.constant 6 : index
    %56 = memref.load %arg4[%c6] : memref<98xf32, #tpu.memory_space<smem>>
    %c7 = arith.constant 7 : index
    %57 = memref.load %arg4[%c7] : memref<98xf32, #tpu.memory_space<smem>>
    %c8 = arith.constant 8 : index
    %58 = memref.load %arg4[%c8] : memref<98xf32, #tpu.memory_space<smem>>
    %c9 = arith.constant 9 : index
    %59 = memref.load %arg4[%c9] : memref<98xf32, #tpu.memory_space<smem>>
    %c10 = arith.constant 10 : index
    %60 = memref.load %arg4[%c10] : memref<98xf32, #tpu.memory_space<smem>>
    %c11 = arith.constant 11 : index
    %61 = memref.load %arg4[%c11] : memref<98xf32, #tpu.memory_space<smem>>
    %c12 = arith.constant 12 : index
    %62 = memref.load %arg4[%c12] : memref<98xf32, #tpu.memory_space<smem>>
    %c13 = arith.constant 13 : index
    %63 = memref.load %arg4[%c13] : memref<98xf32, #tpu.memory_space<smem>>
    %c14 = arith.constant 14 : index
    %64 = memref.load %arg4[%c14] : memref<98xf32, #tpu.memory_space<smem>>
    %c15 = arith.constant 15 : index
    %65 = memref.load %arg4[%c15] : memref<98xf32, #tpu.memory_space<smem>>
    %c16 = arith.constant 16 : index
    %66 = memref.load %arg4[%c16] : memref<98xf32, #tpu.memory_space<smem>>
    %c17 = arith.constant 17 : index
    %67 = memref.load %arg4[%c17] : memref<98xf32, #tpu.memory_space<smem>>
    %c18 = arith.constant 18 : index
    %68 = memref.load %arg4[%c18] : memref<98xf32, #tpu.memory_space<smem>>
    %c19 = arith.constant 19 : index
    %69 = memref.load %arg4[%c19] : memref<98xf32, #tpu.memory_space<smem>>
    %c20 = arith.constant 20 : index
    %70 = memref.load %arg4[%c20] : memref<98xf32, #tpu.memory_space<smem>>
    %c21 = arith.constant 21 : index
    %71 = memref.load %arg4[%c21] : memref<98xf32, #tpu.memory_space<smem>>
    %c22 = arith.constant 22 : index
    %72 = memref.load %arg4[%c22] : memref<98xf32, #tpu.memory_space<smem>>
    %c23 = arith.constant 23 : index
    %73 = memref.load %arg4[%c23] : memref<98xf32, #tpu.memory_space<smem>>
    %c24 = arith.constant 24 : index
    %74 = memref.load %arg4[%c24] : memref<98xf32, #tpu.memory_space<smem>>
    %c25 = arith.constant 25 : index
    %75 = memref.load %arg4[%c25] : memref<98xf32, #tpu.memory_space<smem>>
    %c26 = arith.constant 26 : index
    %76 = memref.load %arg4[%c26] : memref<98xf32, #tpu.memory_space<smem>>
    %c27 = arith.constant 27 : index
    %77 = memref.load %arg4[%c27] : memref<98xf32, #tpu.memory_space<smem>>
    %c28 = arith.constant 28 : index
    %78 = memref.load %arg4[%c28] : memref<98xf32, #tpu.memory_space<smem>>
    %c29 = arith.constant 29 : index
    %79 = memref.load %arg4[%c29] : memref<98xf32, #tpu.memory_space<smem>>
    %c30 = arith.constant 30 : index
    %80 = memref.load %arg4[%c30] : memref<98xf32, #tpu.memory_space<smem>>
    %c31 = arith.constant 31 : index
    %81 = memref.load %arg4[%c31] : memref<98xf32, #tpu.memory_space<smem>>
    %c32 = arith.constant 32 : index
    %82 = memref.load %arg4[%c32] : memref<98xf32, #tpu.memory_space<smem>>
    %c33 = arith.constant 33 : index
    %83 = memref.load %arg4[%c33] : memref<98xf32, #tpu.memory_space<smem>>
    %c34 = arith.constant 34 : index
    %84 = memref.load %arg4[%c34] : memref<98xf32, #tpu.memory_space<smem>>
    %c35 = arith.constant 35 : index
    %85 = memref.load %arg4[%c35] : memref<98xf32, #tpu.memory_space<smem>>
    %c36 = arith.constant 36 : index
    %86 = memref.load %arg4[%c36] : memref<98xf32, #tpu.memory_space<smem>>
    %c37 = arith.constant 37 : index
    %87 = memref.load %arg4[%c37] : memref<98xf32, #tpu.memory_space<smem>>
    %c38 = arith.constant 38 : index
    %88 = memref.load %arg4[%c38] : memref<98xf32, #tpu.memory_space<smem>>
    %c39 = arith.constant 39 : index
    %89 = memref.load %arg4[%c39] : memref<98xf32, #tpu.memory_space<smem>>
    %c40 = arith.constant 40 : index
    %90 = memref.load %arg4[%c40] : memref<98xf32, #tpu.memory_space<smem>>
    %c41 = arith.constant 41 : index
    %91 = memref.load %arg4[%c41] : memref<98xf32, #tpu.memory_space<smem>>
    %c42 = arith.constant 42 : index
    %92 = memref.load %arg4[%c42] : memref<98xf32, #tpu.memory_space<smem>>
    %c43 = arith.constant 43 : index
    %93 = memref.load %arg4[%c43] : memref<98xf32, #tpu.memory_space<smem>>
    %c44 = arith.constant 44 : index
    %94 = memref.load %arg4[%c44] : memref<98xf32, #tpu.memory_space<smem>>
    %c45 = arith.constant 45 : index
    %95 = memref.load %arg4[%c45] : memref<98xf32, #tpu.memory_space<smem>>
    %c46 = arith.constant 46 : index
    %96 = memref.load %arg4[%c46] : memref<98xf32, #tpu.memory_space<smem>>
    %c47 = arith.constant 47 : index
    %97 = memref.load %arg4[%c47] : memref<98xf32, #tpu.memory_space<smem>>
    %c48 = arith.constant 48 : index
    %98 = memref.load %arg4[%c48] : memref<98xf32, #tpu.memory_space<smem>>
    %c49 = arith.constant 49 : index
    %99 = memref.load %arg4[%c49] : memref<98xf32, #tpu.memory_space<smem>>
    %c50 = arith.constant 50 : index
    %100 = memref.load %arg4[%c50] : memref<98xf32, #tpu.memory_space<smem>>
    %c51 = arith.constant 51 : index
    %101 = memref.load %arg4[%c51] : memref<98xf32, #tpu.memory_space<smem>>
    %c52 = arith.constant 52 : index
    %102 = memref.load %arg4[%c52] : memref<98xf32, #tpu.memory_space<smem>>
    %c53 = arith.constant 53 : index
    %103 = memref.load %arg4[%c53] : memref<98xf32, #tpu.memory_space<smem>>
    %c54 = arith.constant 54 : index
    %104 = memref.load %arg4[%c54] : memref<98xf32, #tpu.memory_space<smem>>
    %c55 = arith.constant 55 : index
    %105 = memref.load %arg4[%c55] : memref<98xf32, #tpu.memory_space<smem>>
    %c56 = arith.constant 56 : index
    %106 = memref.load %arg4[%c56] : memref<98xf32, #tpu.memory_space<smem>>
    %c57 = arith.constant 57 : index
    %107 = memref.load %arg4[%c57] : memref<98xf32, #tpu.memory_space<smem>>
    %c58 = arith.constant 58 : index
    %108 = memref.load %arg4[%c58] : memref<98xf32, #tpu.memory_space<smem>>
    %c59 = arith.constant 59 : index
    %109 = memref.load %arg4[%c59] : memref<98xf32, #tpu.memory_space<smem>>
    %c60 = arith.constant 60 : index
    %110 = memref.load %arg4[%c60] : memref<98xf32, #tpu.memory_space<smem>>
    %c61 = arith.constant 61 : index
    %111 = memref.load %arg4[%c61] : memref<98xf32, #tpu.memory_space<smem>>
    %c62 = arith.constant 62 : index
    %112 = memref.load %arg4[%c62] : memref<98xf32, #tpu.memory_space<smem>>
    %c63 = arith.constant 63 : index
    %113 = memref.load %arg4[%c63] : memref<98xf32, #tpu.memory_space<smem>>
    %c64 = arith.constant 64 : index
    %114 = memref.load %arg4[%c64] : memref<98xf32, #tpu.memory_space<smem>>
    %c65 = arith.constant 65 : index
    %115 = memref.load %arg4[%c65] : memref<98xf32, #tpu.memory_space<smem>>
    %c66 = arith.constant 66 : index
    %116 = memref.load %arg4[%c66] : memref<98xf32, #tpu.memory_space<smem>>
    %c67 = arith.constant 67 : index
    %117 = memref.load %arg4[%c67] : memref<98xf32, #tpu.memory_space<smem>>
    %c68 = arith.constant 68 : index
    %118 = memref.load %arg4[%c68] : memref<98xf32, #tpu.memory_space<smem>>
    %c69 = arith.constant 69 : index
    %119 = memref.load %arg4[%c69] : memref<98xf32, #tpu.memory_space<smem>>
    %c70 = arith.constant 70 : index
    %120 = memref.load %arg4[%c70] : memref<98xf32, #tpu.memory_space<smem>>
    %c71 = arith.constant 71 : index
    %121 = memref.load %arg4[%c71] : memref<98xf32, #tpu.memory_space<smem>>
    %c72 = arith.constant 72 : index
    %122 = memref.load %arg4[%c72] : memref<98xf32, #tpu.memory_space<smem>>
    %c73 = arith.constant 73 : index
    %123 = memref.load %arg4[%c73] : memref<98xf32, #tpu.memory_space<smem>>
    %c74 = arith.constant 74 : index
    %124 = memref.load %arg4[%c74] : memref<98xf32, #tpu.memory_space<smem>>
    %c75 = arith.constant 75 : index
    %125 = memref.load %arg4[%c75] : memref<98xf32, #tpu.memory_space<smem>>
    %c76 = arith.constant 76 : index
    %126 = memref.load %arg4[%c76] : memref<98xf32, #tpu.memory_space<smem>>
    %c77 = arith.constant 77 : index
    %127 = memref.load %arg4[%c77] : memref<98xf32, #tpu.memory_space<smem>>
    %c78 = arith.constant 78 : index
    %128 = memref.load %arg4[%c78] : memref<98xf32, #tpu.memory_space<smem>>
    %c79 = arith.constant 79 : index
    %129 = memref.load %arg4[%c79] : memref<98xf32, #tpu.memory_space<smem>>
    %c80 = arith.constant 80 : index
    %130 = memref.load %arg4[%c80] : memref<98xf32, #tpu.memory_space<smem>>
    %c81 = arith.constant 81 : index
    %131 = memref.load %arg4[%c81] : memref<98xf32, #tpu.memory_space<smem>>
    %c82 = arith.constant 82 : index
    %132 = memref.load %arg4[%c82] : memref<98xf32, #tpu.memory_space<smem>>
    %c83 = arith.constant 83 : index
    %133 = memref.load %arg4[%c83] : memref<98xf32, #tpu.memory_space<smem>>
    %c84 = arith.constant 84 : index
    %134 = memref.load %arg4[%c84] : memref<98xf32, #tpu.memory_space<smem>>
    %c85 = arith.constant 85 : index
    %135 = memref.load %arg4[%c85] : memref<98xf32, #tpu.memory_space<smem>>
    %c86 = arith.constant 86 : index
    %136 = memref.load %arg4[%c86] : memref<98xf32, #tpu.memory_space<smem>>
    %c87 = arith.constant 87 : index
    %137 = memref.load %arg4[%c87] : memref<98xf32, #tpu.memory_space<smem>>
    %c88 = arith.constant 88 : index
    %138 = memref.load %arg4[%c88] : memref<98xf32, #tpu.memory_space<smem>>
    %c89 = arith.constant 89 : index
    %139 = memref.load %arg4[%c89] : memref<98xf32, #tpu.memory_space<smem>>
    %c90 = arith.constant 90 : index
    %140 = memref.load %arg4[%c90] : memref<98xf32, #tpu.memory_space<smem>>
    %c91 = arith.constant 91 : index
    %141 = memref.load %arg4[%c91] : memref<98xf32, #tpu.memory_space<smem>>
    %c92 = arith.constant 92 : index
    %142 = memref.load %arg4[%c92] : memref<98xf32, #tpu.memory_space<smem>>
    %c93 = arith.constant 93 : index
    %143 = memref.load %arg4[%c93] : memref<98xf32, #tpu.memory_space<smem>>
    %c94 = arith.constant 94 : index
    %144 = memref.load %arg4[%c94] : memref<98xf32, #tpu.memory_space<smem>>
    %c95 = arith.constant 95 : index
    %145 = memref.load %arg4[%c95] : memref<98xf32, #tpu.memory_space<smem>>
    %c96 = arith.constant 96 : index
    %146 = memref.load %arg4[%c96] : memref<98xf32, #tpu.memory_space<smem>>
    %c97 = arith.constant 97 : index
    %147 = memref.load %arg4[%c97] : memref<98xf32, #tpu.memory_space<smem>>
    %cst_27 = arith.constant 0.000000e+00 : f32
    %148 = vector.broadcast %cst_27 : f32 to vector<1x256xf32>
    %cst_28 = arith.constant 0.000000e+00 : f32
    %149 = vector.broadcast %cst_28 : f32 to vector<1x256xf32>
    %cst_29 = arith.constant 0.000000e+00 : f32
    %150 = vector.broadcast %cst_29 : f32 to vector<1x256xf32>
    %cst_30 = arith.constant 0.000000e+00 : f32
    %151 = vector.broadcast %cst_30 : f32 to vector<1x256xf32>
    %c-3_i32 = arith.constant -3 : i32
    %152 = vector.broadcast %c-3_i32 : i32 to vector<1x256xi32>
    %153 = arith.addi %49, %152 : vector<1x256xi32>
    %c0_i32_31 = arith.constant 0 : i32
    %154 = vector.broadcast %c0_i32_31 : i32 to vector<1x256xi32>
    %155 = arith.cmpi sge, %153, %154 : vector<1x256xi32>
    %c-3_i32_32 = arith.constant -3 : i32
    %156 = vector.broadcast %c-3_i32_32 : i32 to vector<1x256xi32>
    %157 = arith.addi %49, %156 : vector<1x256xi32>
    %c16_i32_33 = arith.constant 16 : i32
    %158 = vector.broadcast %c16_i32_33 : i32 to vector<1x256xi32>
    %159 = arith.cmpi slt, %157, %158 : vector<1x256xi32>
    %160 = arith.andi %155, %159 : vector<1x256xi1>
    %161 = arith.extui %160 : vector<1x256xi1> to vector<1x256xi32>
    %162 = arith.sitofp %161 : vector<1x256xi32> to vector<1x256xf32>
    %c0_34 = arith.constant 0 : index
    %c77_35 = arith.constant 77 : index
    %163 = vector.load %arg6[%c0_34, %c77_35] : memref<2x512xf32, #tpu.memory_space<vmem>>, vector<2x256xf32>
    %164 = vector.extract_strided_slice %163 {offsets = [0, 0], sizes = [1, 256], strides = [1, 1]} : vector<2x256xf32> to vector<1x256xf32>
    %165 = vector.broadcast %50 : f32 to vector<1x256xf32>
    %166 = arith.mulf %164, %165 : vector<1x256xf32>
    %167 = vector.extract_strided_slice %163 {offsets = [1, 0], sizes = [1, 256], strides = [1, 1]} : vector<2x256xf32> to vector<1x256xf32>
    %168 = vector.broadcast %99 : f32 to vector<1x256xf32>
    %169 = arith.mulf %167, %168 : vector<1x256xf32>
    %170 = arith.addf %166, %169 : vector<1x256xf32>
    %171 = arith.mulf %170, %162 : vector<1x256xf32>
    %172 = arith.addf %148, %171 : vector<1x256xf32>
    %c0_36 = arith.constant 0 : index
    %c93_37 = arith.constant 93 : index
    %173 = vector.load %arg6[%c0_36, %c93_37] : memref<2x512xf32, #tpu.memory_space<vmem>>, vector<2x256xf32>
    %174 = vector.extract_strided_slice %173 {offsets = [0, 0], sizes = [1, 256], strides = [1, 1]} : vector<2x256xf32> to vector<1x256xf32>
    %175 = vector.broadcast %57 : f32 to vector<1x256xf32>
    %176 = arith.mulf %174, %175 : vector<1x256xf32>
    %177 = vector.extract_strided_slice %173 {offsets = [1, 0], sizes = [1, 256], strides = [1, 1]} : vector<2x256xf32> to vector<1x256xf32>
    %178 = vector.broadcast %106 : f32 to vector<1x256xf32>
    %179 = arith.mulf %177, %178 : vector<1x256xf32>
    %180 = arith.addf %176, %179 : vector<1x256xf32>
    %181 = arith.mulf %180, %162 : vector<1x256xf32>
    %182 = arith.addf %149, %181 : vector<1x256xf32>
    %c0_38 = arith.constant 0 : index
    %c109 = arith.constant 109 : index
    %183 = vector.load %arg6[%c0_38, %c109] : memref<2x512xf32, #tpu.memory_space<vmem>>, vector<2x256xf32>
    %184 = vector.extract_strided_slice %183 {offsets = [0, 0], sizes = [1, 256], strides = [1, 1]} : vector<2x256xf32> to vector<1x256xf32>
    %185 = vector.broadcast %64 : f32 to vector<1x256xf32>
    %186 = arith.mulf %184, %185 : vector<1x256xf32>
    %187 = vector.extract_strided_slice %183 {offsets = [1, 0], sizes = [1, 256], strides = [1, 1]} : vector<2x256xf32> to vector<1x256xf32>
    %188 = vector.broadcast %113 : f32 to vector<1x256xf32>
    %189 = arith.mulf %187, %188 : vector<1x256xf32>
    %190 = arith.addf %186, %189 : vector<1x256xf32>
    %191 = arith.mulf %190, %162 : vector<1x256xf32>
    %192 = arith.addf %150, %191 : vector<1x256xf32>
    %c0_39 = arith.constant 0 : index
    %c125 = arith.constant 125 : index
    %193 = vector.load %arg6[%c0_39, %c125] : memref<2x512xf32, #tpu.memory_space<vmem>>, vector<2x256xf32>
    %194 = vector.extract_strided_slice %193 {offsets = [0, 0], sizes = [1, 256], strides = [1, 1]} : vector<2x256xf32> to vector<1x256xf32>
    %195 = vector.broadcast %71 : f32 to vector<1x256xf32>
    %196 = arith.mulf %194, %195 : vector<1x256xf32>
    %197 = vector.extract_strided_slice %193 {offsets = [1, 0], sizes = [1, 256], strides = [1, 1]} : vector<2x256xf32> to vector<1x256xf32>
    %198 = vector.broadcast %120 : f32 to vector<1x256xf32>
    %199 = arith.mulf %197, %198 : vector<1x256xf32>
    %200 = arith.addf %196, %199 : vector<1x256xf32>
    %201 = arith.mulf %200, %162 : vector<1x256xf32>
    %202 = arith.addf %151, %201 : vector<1x256xf32>
    %c0_40 = arith.constant 0 : index
    %c141 = arith.constant 141 : index
    %203 = vector.load %arg6[%c0_40, %c141] : memref<2x512xf32, #tpu.memory_space<vmem>>, vector<2x256xf32>
    %204 = vector.extract_strided_slice %203 {offsets = [0, 0], sizes = [1, 256], strides = [1, 1]} : vector<2x256xf32> to vector<1x256xf32>
    %205 = vector.broadcast %78 : f32 to vector<1x256xf32>
    %206 = arith.mulf %204, %205 : vector<1x256xf32>
    %207 = vector.extract_strided_slice %203 {offsets = [1, 0], sizes = [1, 256], strides = [1, 1]} : vector<2x256xf32> to vector<1x256xf32>
    %208 = vector.broadcast %127 : f32 to vector<1x256xf32>
    %209 = arith.mulf %207, %208 : vector<1x256xf32>
    %210 = arith.addf %206, %209 : vector<1x256xf32>
    %211 = arith.mulf %210, %162 : vector<1x256xf32>
    %212 = arith.addf %172, %211 : vector<1x256xf32>
    %c0_41 = arith.constant 0 : index
    %c157 = arith.constant 157 : index
    %213 = vector.load %arg6[%c0_41, %c157] : memref<2x512xf32, #tpu.memory_space<vmem>>, vector<2x256xf32>
    %214 = vector.extract_strided_slice %213 {offsets = [0, 0], sizes = [1, 256], strides = [1, 1]} : vector<2x256xf32> to vector<1x256xf32>
    %215 = vector.broadcast %85 : f32 to vector<1x256xf32>
    %216 = arith.mulf %214, %215 : vector<1x256xf32>
    %217 = vector.extract_strided_slice %213 {offsets = [1, 0], sizes = [1, 256], strides = [1, 1]} : vector<2x256xf32> to vector<1x256xf32>
    %218 = vector.broadcast %134 : f32 to vector<1x256xf32>
    %219 = arith.mulf %217, %218 : vector<1x256xf32>
    %220 = arith.addf %216, %219 : vector<1x256xf32>
    %221 = arith.mulf %220, %162 : vector<1x256xf32>
    %222 = arith.addf %182, %221 : vector<1x256xf32>
    %c0_42 = arith.constant 0 : index
    %c173 = arith.constant 173 : index
    %223 = vector.load %arg6[%c0_42, %c173] : memref<2x512xf32, #tpu.memory_space<vmem>>, vector<2x256xf32>
    %224 = vector.extract_strided_slice %223 {offsets = [0, 0], sizes = [1, 256], strides = [1, 1]} : vector<2x256xf32> to vector<1x256xf32>
    %225 = vector.broadcast %92 : f32 to vector<1x256xf32>
    %226 = arith.mulf %224, %225 : vector<1x256xf32>
    %227 = vector.extract_strided_slice %223 {offsets = [1, 0], sizes = [1, 256], strides = [1, 1]} : vector<2x256xf32> to vector<1x256xf32>
    %228 = vector.broadcast %141 : f32 to vector<1x256xf32>
    %229 = arith.mulf %227, %228 : vector<1x256xf32>
    %230 = arith.addf %226, %229 : vector<1x256xf32>
    %231 = arith.mulf %230, %162 : vector<1x256xf32>
    %232 = arith.addf %192, %231 : vector<1x256xf32>
    %c-2_i32 = arith.constant -2 : i32
    %233 = vector.broadcast %c-2_i32 : i32 to vector<1x256xi32>
    %234 = arith.addi %49, %233 : vector<1x256xi32>
    %c0_i32_43 = arith.constant 0 : i32
    %235 = vector.broadcast %c0_i32_43 : i32 to vector<1x256xi32>
    %236 = arith.cmpi sge, %234, %235 : vector<1x256xi32>
    %c-2_i32_44 = arith.constant -2 : i32
    %237 = vector.broadcast %c-2_i32_44 : i32 to vector<1x256xi32>
    %238 = arith.addi %49, %237 : vector<1x256xi32>
    %c16_i32_45 = arith.constant 16 : i32
    %239 = vector.broadcast %c16_i32_45 : i32 to vector<1x256xi32>
    %240 = arith.cmpi slt, %238, %239 : vector<1x256xi32>
    %241 = arith.andi %236, %240 : vector<1x256xi1>
    %242 = arith.extui %241 : vector<1x256xi1> to vector<1x256xi32>
    %243 = arith.sitofp %242 : vector<1x256xi32> to vector<1x256xf32>
    %c0_46 = arith.constant 0 : index
    %c78_47 = arith.constant 78 : index
    %244 = vector.load %arg6[%c0_46, %c78_47] : memref<2x512xf32, #tpu.memory_space<vmem>>, vector<2x256xf32>
    %245 = vector.extract_strided_slice %244 {offsets = [0, 0], sizes = [1, 256], strides = [1, 1]} : vector<2x256xf32> to vector<1x256xf32>
    %246 = vector.broadcast %51 : f32 to vector<1x256xf32>
    %247 = arith.mulf %245, %246 : vector<1x256xf32>
    %248 = vector.extract_strided_slice %244 {offsets = [1, 0], sizes = [1, 256], strides = [1, 1]} : vector<2x256xf32> to vector<1x256xf32>
    %249 = vector.broadcast %100 : f32 to vector<1x256xf32>
    %250 = arith.mulf %248, %249 : vector<1x256xf32>
    %251 = arith.addf %247, %250 : vector<1x256xf32>
    %252 = arith.mulf %251, %243 : vector<1x256xf32>
    %253 = arith.addf %202, %252 : vector<1x256xf32>
    %c0_48 = arith.constant 0 : index
    %c94_49 = arith.constant 94 : index
    %254 = vector.load %arg6[%c0_48, %c94_49] : memref<2x512xf32, #tpu.memory_space<vmem>>, vector<2x256xf32>
    %255 = vector.extract_strided_slice %254 {offsets = [0, 0], sizes = [1, 256], strides = [1, 1]} : vector<2x256xf32> to vector<1x256xf32>
    %256 = vector.broadcast %58 : f32 to vector<1x256xf32>
    %257 = arith.mulf %255, %256 : vector<1x256xf32>
    %258 = vector.extract_strided_slice %254 {offsets = [1, 0], sizes = [1, 256], strides = [1, 1]} : vector<2x256xf32> to vector<1x256xf32>
    %259 = vector.broadcast %107 : f32 to vector<1x256xf32>
    %260 = arith.mulf %258, %259 : vector<1x256xf32>
    %261 = arith.addf %257, %260 : vector<1x256xf32>
    %262 = arith.mulf %261, %243 : vector<1x256xf32>
    %263 = arith.addf %212, %262 : vector<1x256xf32>
    %c0_50 = arith.constant 0 : index
    %c110 = arith.constant 110 : index
    %264 = vector.load %arg6[%c0_50, %c110] : memref<2x512xf32, #tpu.memory_space<vmem>>, vector<2x256xf32>
    %265 = vector.extract_strided_slice %264 {offsets = [0, 0], sizes = [1, 256], strides = [1, 1]} : vector<2x256xf32> to vector<1x256xf32>
    %266 = vector.broadcast %65 : f32 to vector<1x256xf32>
    %267 = arith.mulf %265, %266 : vector<1x256xf32>
    %268 = vector.extract_strided_slice %264 {offsets = [1, 0], sizes = [1, 256], strides = [1, 1]} : vector<2x256xf32> to vector<1x256xf32>
    %269 = vector.broadcast %114 : f32 to vector<1x256xf32>
    %270 = arith.mulf %268, %269 : vector<1x256xf32>
    %271 = arith.addf %267, %270 : vector<1x256xf32>
    %272 = arith.mulf %271, %243 : vector<1x256xf32>
    %273 = arith.addf %222, %272 : vector<1x256xf32>
    %c0_51 = arith.constant 0 : index
    %c126 = arith.constant 126 : index
    %274 = vector.load %arg6[%c0_51, %c126] : memref<2x512xf32, #tpu.memory_space<vmem>>, vector<2x256xf32>
    %275 = vector.extract_strided_slice %274 {offsets = [0, 0], sizes = [1, 256], strides = [1, 1]} : vector<2x256xf32> to vector<1x256xf32>
    %276 = vector.broadcast %72 : f32 to vector<1x256xf32>
    %277 = arith.mulf %275, %276 : vector<1x256xf32>
    %278 = vector.extract_strided_slice %274 {offsets = [1, 0], sizes = [1, 256], strides = [1, 1]} : vector<2x256xf32> to vector<1x256xf32>
    %279 = vector.broadcast %121 : f32 to vector<1x256xf32>
    %280 = arith.mulf %278, %279 : vector<1x256xf32>
    %281 = arith.addf %277, %280 : vector<1x256xf32>
    %282 = arith.mulf %281, %243 : vector<1x256xf32>
    %283 = arith.addf %232, %282 : vector<1x256xf32>
    %c0_52 = arith.constant 0 : index
    %c142 = arith.constant 142 : index
    %284 = vector.load %arg6[%c0_52, %c142] : memref<2x512xf32, #tpu.memory_space<vmem>>, vector<2x256xf32>
    %285 = vector.extract_strided_slice %284 {offsets = [0, 0], sizes = [1, 256], strides = [1, 1]} : vector<2x256xf32> to vector<1x256xf32>
    %286 = vector.broadcast %79 : f32 to vector<1x256xf32>
    %287 = arith.mulf %285, %286 : vector<1x256xf32>
    %288 = vector.extract_strided_slice %284 {offsets = [1, 0], sizes = [1, 256], strides = [1, 1]} : vector<2x256xf32> to vector<1x256xf32>
    %289 = vector.broadcast %128 : f32 to vector<1x256xf32>
    %290 = arith.mulf %288, %289 : vector<1x256xf32>
    %291 = arith.addf %287, %290 : vector<1x256xf32>
    %292 = arith.mulf %291, %243 : vector<1x256xf32>
    %293 = arith.addf %253, %292 : vector<1x256xf32>
    %c0_53 = arith.constant 0 : index
    %c158 = arith.constant 158 : index
    %294 = vector.load %arg6[%c0_53, %c158] : memref<2x512xf32, #tpu.memory_space<vmem>>, vector<2x256xf32>
    %295 = vector.extract_strided_slice %294 {offsets = [0, 0], sizes = [1, 256], strides = [1, 1]} : vector<2x256xf32> to vector<1x256xf32>
    %296 = vector.broadcast %86 : f32 to vector<1x256xf32>
    %297 = arith.mulf %295, %296 : vector<1x256xf32>
    %298 = vector.extract_strided_slice %294 {offsets = [1, 0], sizes = [1, 256], strides = [1, 1]} : vector<2x256xf32> to vector<1x256xf32>
    %299 = vector.broadcast %135 : f32 to vector<1x256xf32>
    %300 = arith.mulf %298, %299 : vector<1x256xf32>
    %301 = arith.addf %297, %300 : vector<1x256xf32>
    %302 = arith.mulf %301, %243 : vector<1x256xf32>
    %303 = arith.addf %263, %302 : vector<1x256xf32>
    %c0_54 = arith.constant 0 : index
    %c174 = arith.constant 174 : index
    %304 = vector.load %arg6[%c0_54, %c174] : memref<2x512xf32, #tpu.memory_space<vmem>>, vector<2x256xf32>
    %305 = vector.extract_strided_slice %304 {offsets = [0, 0], sizes = [1, 256], strides = [1, 1]} : vector<2x256xf32> to vector<1x256xf32>
    %306 = vector.broadcast %93 : f32 to vector<1x256xf32>
    %307 = arith.mulf %305, %306 : vector<1x256xf32>
    %308 = vector.extract_strided_slice %304 {offsets = [1, 0], sizes = [1, 256], strides = [1, 1]} : vector<2x256xf32> to vector<1x256xf32>
    %309 = vector.broadcast %142 : f32 to vector<1x256xf32>
    %310 = arith.mulf %308, %309 : vector<1x256xf32>
    %311 = arith.addf %307, %310 : vector<1x256xf32>
    %312 = arith.mulf %311, %243 : vector<1x256xf32>
    %313 = arith.addf %273, %312 : vector<1x256xf32>
    %c-1_i32 = arith.constant -1 : i32
    %314 = vector.broadcast %c-1_i32 : i32 to vector<1x256xi32>
    %315 = arith.addi %49, %314 : vector<1x256xi32>
    %c0_i32_55 = arith.constant 0 : i32
    %316 = vector.broadcast %c0_i32_55 : i32 to vector<1x256xi32>
    %317 = arith.cmpi sge, %315, %316 : vector<1x256xi32>
    %c-1_i32_56 = arith.constant -1 : i32
    %318 = vector.broadcast %c-1_i32_56 : i32 to vector<1x256xi32>
    %319 = arith.addi %49, %318 : vector<1x256xi32>
    %c16_i32_57 = arith.constant 16 : i32
    %320 = vector.broadcast %c16_i32_57 : i32 to vector<1x256xi32>
    %321 = arith.cmpi slt, %319, %320 : vector<1x256xi32>
    %322 = arith.andi %317, %321 : vector<1x256xi1>
    %323 = arith.extui %322 : vector<1x256xi1> to vector<1x256xi32>
    %324 = arith.sitofp %323 : vector<1x256xi32> to vector<1x256xf32>
    %c0_58 = arith.constant 0 : index
    %c79_59 = arith.constant 79 : index
    %325 = vector.load %arg6[%c0_58, %c79_59] : memref<2x512xf32, #tpu.memory_space<vmem>>, vector<2x256xf32>
    %326 = vector.extract_strided_slice %325 {offsets = [0, 0], sizes = [1, 256], strides = [1, 1]} : vector<2x256xf32> to vector<1x256xf32>
    %327 = vector.broadcast %52 : f32 to vector<1x256xf32>
    %328 = arith.mulf %326, %327 : vector<1x256xf32>
    %329 = vector.extract_strided_slice %325 {offsets = [1, 0], sizes = [1, 256], strides = [1, 1]} : vector<2x256xf32> to vector<1x256xf32>
    %330 = vector.broadcast %101 : f32 to vector<1x256xf32>
    %331 = arith.mulf %329, %330 : vector<1x256xf32>
    %332 = arith.addf %328, %331 : vector<1x256xf32>
    %333 = arith.mulf %332, %324 : vector<1x256xf32>
    %334 = arith.addf %283, %333 : vector<1x256xf32>
    %c0_60 = arith.constant 0 : index
    %c95_61 = arith.constant 95 : index
    %335 = vector.load %arg6[%c0_60, %c95_61] : memref<2x512xf32, #tpu.memory_space<vmem>>, vector<2x256xf32>
    %336 = vector.extract_strided_slice %335 {offsets = [0, 0], sizes = [1, 256], strides = [1, 1]} : vector<2x256xf32> to vector<1x256xf32>
    %337 = vector.broadcast %59 : f32 to vector<1x256xf32>
    %338 = arith.mulf %336, %337 : vector<1x256xf32>
    %339 = vector.extract_strided_slice %335 {offsets = [1, 0], sizes = [1, 256], strides = [1, 1]} : vector<2x256xf32> to vector<1x256xf32>
    %340 = vector.broadcast %108 : f32 to vector<1x256xf32>
    %341 = arith.mulf %339, %340 : vector<1x256xf32>
    %342 = arith.addf %338, %341 : vector<1x256xf32>
    %343 = arith.mulf %342, %324 : vector<1x256xf32>
    %344 = arith.addf %293, %343 : vector<1x256xf32>
    %c0_62 = arith.constant 0 : index
    %c111 = arith.constant 111 : index
    %345 = vector.load %arg6[%c0_62, %c111] : memref<2x512xf32, #tpu.memory_space<vmem>>, vector<2x256xf32>
    %346 = vector.extract_strided_slice %345 {offsets = [0, 0], sizes = [1, 256], strides = [1, 1]} : vector<2x256xf32> to vector<1x256xf32>
    %347 = vector.broadcast %66 : f32 to vector<1x256xf32>
    %348 = arith.mulf %346, %347 : vector<1x256xf32>
    %349 = vector.extract_strided_slice %345 {offsets = [1, 0], sizes = [1, 256], strides = [1, 1]} : vector<2x256xf32> to vector<1x256xf32>
    %350 = vector.broadcast %115 : f32 to vector<1x256xf32>
    %351 = arith.mulf %349, %350 : vector<1x256xf32>
    %352 = arith.addf %348, %351 : vector<1x256xf32>
    %353 = arith.mulf %352, %324 : vector<1x256xf32>
    %354 = arith.addf %303, %353 : vector<1x256xf32>
    %c0_63 = arith.constant 0 : index
    %c127 = arith.constant 127 : index
    %355 = vector.load %arg6[%c0_63, %c127] : memref<2x512xf32, #tpu.memory_space<vmem>>, vector<2x256xf32>
    %356 = vector.extract_strided_slice %355 {offsets = [0, 0], sizes = [1, 256], strides = [1, 1]} : vector<2x256xf32> to vector<1x256xf32>
    %357 = vector.broadcast %73 : f32 to vector<1x256xf32>
    %358 = arith.mulf %356, %357 : vector<1x256xf32>
    %359 = vector.extract_strided_slice %355 {offsets = [1, 0], sizes = [1, 256], strides = [1, 1]} : vector<2x256xf32> to vector<1x256xf32>
    %360 = vector.broadcast %122 : f32 to vector<1x256xf32>
    %361 = arith.mulf %359, %360 : vector<1x256xf32>
    %362 = arith.addf %358, %361 : vector<1x256xf32>
    %363 = arith.mulf %362, %324 : vector<1x256xf32>
    %364 = arith.addf %313, %363 : vector<1x256xf32>
    %c0_64 = arith.constant 0 : index
    %c143 = arith.constant 143 : index
    %365 = vector.load %arg6[%c0_64, %c143] : memref<2x512xf32, #tpu.memory_space<vmem>>, vector<2x256xf32>
    %366 = vector.extract_strided_slice %365 {offsets = [0, 0], sizes = [1, 256], strides = [1, 1]} : vector<2x256xf32> to vector<1x256xf32>
    %367 = vector.broadcast %80 : f32 to vector<1x256xf32>
    %368 = arith.mulf %366, %367 : vector<1x256xf32>
    %369 = vector.extract_strided_slice %365 {offsets = [1, 0], sizes = [1, 256], strides = [1, 1]} : vector<2x256xf32> to vector<1x256xf32>
    %370 = vector.broadcast %129 : f32 to vector<1x256xf32>
    %371 = arith.mulf %369, %370 : vector<1x256xf32>
    %372 = arith.addf %368, %371 : vector<1x256xf32>
    %373 = arith.mulf %372, %324 : vector<1x256xf32>
    %374 = arith.addf %334, %373 : vector<1x256xf32>
    %c0_65 = arith.constant 0 : index
    %c159 = arith.constant 159 : index
    %375 = vector.load %arg6[%c0_65, %c159] : memref<2x512xf32, #tpu.memory_space<vmem>>, vector<2x256xf32>
    %376 = vector.extract_strided_slice %375 {offsets = [0, 0], sizes = [1, 256], strides = [1, 1]} : vector<2x256xf32> to vector<1x256xf32>
    %377 = vector.broadcast %87 : f32 to vector<1x256xf32>
    %378 = arith.mulf %376, %377 : vector<1x256xf32>
    %379 = vector.extract_strided_slice %375 {offsets = [1, 0], sizes = [1, 256], strides = [1, 1]} : vector<2x256xf32> to vector<1x256xf32>
    %380 = vector.broadcast %136 : f32 to vector<1x256xf32>
    %381 = arith.mulf %379, %380 : vector<1x256xf32>
    %382 = arith.addf %378, %381 : vector<1x256xf32>
    %383 = arith.mulf %382, %324 : vector<1x256xf32>
    %384 = arith.addf %344, %383 : vector<1x256xf32>
    %c0_66 = arith.constant 0 : index
    %c175 = arith.constant 175 : index
    %385 = vector.load %arg6[%c0_66, %c175] : memref<2x512xf32, #tpu.memory_space<vmem>>, vector<2x256xf32>
    %386 = vector.extract_strided_slice %385 {offsets = [0, 0], sizes = [1, 256], strides = [1, 1]} : vector<2x256xf32> to vector<1x256xf32>
    %387 = vector.broadcast %94 : f32 to vector<1x256xf32>
    %388 = arith.mulf %386, %387 : vector<1x256xf32>
    %389 = vector.extract_strided_slice %385 {offsets = [1, 0], sizes = [1, 256], strides = [1, 1]} : vector<2x256xf32> to vector<1x256xf32>
    %390 = vector.broadcast %143 : f32 to vector<1x256xf32>
    %391 = arith.mulf %389, %390 : vector<1x256xf32>
    %392 = arith.addf %388, %391 : vector<1x256xf32>
    %393 = arith.mulf %392, %324 : vector<1x256xf32>
    %394 = arith.addf %354, %393 : vector<1x256xf32>
    %c0_i32_67 = arith.constant 0 : i32
    %395 = vector.broadcast %c0_i32_67 : i32 to vector<1x256xi32>
    %396 = arith.addi %49, %395 : vector<1x256xi32>
    %c0_i32_68 = arith.constant 0 : i32
    %397 = vector.broadcast %c0_i32_68 : i32 to vector<1x256xi32>
    %398 = arith.cmpi sge, %396, %397 : vector<1x256xi32>
    %c0_i32_69 = arith.constant 0 : i32
    %399 = vector.broadcast %c0_i32_69 : i32 to vector<1x256xi32>
    %400 = arith.addi %49, %399 : vector<1x256xi32>
    %c16_i32_70 = arith.constant 16 : i32
    %401 = vector.broadcast %c16_i32_70 : i32 to vector<1x256xi32>
    %402 = arith.cmpi slt, %400, %401 : vector<1x256xi32>
    %403 = arith.andi %398, %402 : vector<1x256xi1>
    %404 = arith.extui %403 : vector<1x256xi1> to vector<1x256xi32>
    %405 = arith.sitofp %404 : vector<1x256xi32> to vector<1x256xf32>
    %c0_71 = arith.constant 0 : index
    %c80_72 = arith.constant 80 : index
    %406 = vector.load %arg6[%c0_71, %c80_72] : memref<2x512xf32, #tpu.memory_space<vmem>>, vector<2x256xf32>
    %407 = vector.extract_strided_slice %406 {offsets = [0, 0], sizes = [1, 256], strides = [1, 1]} : vector<2x256xf32> to vector<1x256xf32>
    %408 = vector.broadcast %53 : f32 to vector<1x256xf32>
    %409 = arith.mulf %407, %408 : vector<1x256xf32>
    %410 = vector.extract_strided_slice %406 {offsets = [1, 0], sizes = [1, 256], strides = [1, 1]} : vector<2x256xf32> to vector<1x256xf32>
    %411 = vector.broadcast %102 : f32 to vector<1x256xf32>
    %412 = arith.mulf %410, %411 : vector<1x256xf32>
    %413 = arith.addf %409, %412 : vector<1x256xf32>
    %414 = arith.mulf %413, %405 : vector<1x256xf32>
    %415 = arith.addf %364, %414 : vector<1x256xf32>
    %c0_73 = arith.constant 0 : index
    %c96_74 = arith.constant 96 : index
    %416 = vector.load %arg6[%c0_73, %c96_74] : memref<2x512xf32, #tpu.memory_space<vmem>>, vector<2x256xf32>
    %417 = vector.extract_strided_slice %416 {offsets = [0, 0], sizes = [1, 256], strides = [1, 1]} : vector<2x256xf32> to vector<1x256xf32>
    %418 = vector.broadcast %60 : f32 to vector<1x256xf32>
    %419 = arith.mulf %417, %418 : vector<1x256xf32>
    %420 = vector.extract_strided_slice %416 {offsets = [1, 0], sizes = [1, 256], strides = [1, 1]} : vector<2x256xf32> to vector<1x256xf32>
    %421 = vector.broadcast %109 : f32 to vector<1x256xf32>
    %422 = arith.mulf %420, %421 : vector<1x256xf32>
    %423 = arith.addf %419, %422 : vector<1x256xf32>
    %424 = arith.mulf %423, %405 : vector<1x256xf32>
    %425 = arith.addf %374, %424 : vector<1x256xf32>
    %c0_75 = arith.constant 0 : index
    %c112 = arith.constant 112 : index
    %426 = vector.load %arg6[%c0_75, %c112] : memref<2x512xf32, #tpu.memory_space<vmem>>, vector<2x256xf32>
    %427 = vector.extract_strided_slice %426 {offsets = [0, 0], sizes = [1, 256], strides = [1, 1]} : vector<2x256xf32> to vector<1x256xf32>
    %428 = vector.broadcast %67 : f32 to vector<1x256xf32>
    %429 = arith.mulf %427, %428 : vector<1x256xf32>
    %430 = vector.extract_strided_slice %426 {offsets = [1, 0], sizes = [1, 256], strides = [1, 1]} : vector<2x256xf32> to vector<1x256xf32>
    %431 = vector.broadcast %116 : f32 to vector<1x256xf32>
    %432 = arith.mulf %430, %431 : vector<1x256xf32>
    %433 = arith.addf %429, %432 : vector<1x256xf32>
    %434 = arith.mulf %433, %405 : vector<1x256xf32>
    %435 = arith.addf %384, %434 : vector<1x256xf32>
    %c0_76 = arith.constant 0 : index
    %c128_77 = arith.constant 128 : index
    %436 = vector.load %arg6[%c0_76, %c128_77] : memref<2x512xf32, #tpu.memory_space<vmem>>, vector<2x256xf32>
    %437 = vector.extract_strided_slice %436 {offsets = [0, 0], sizes = [1, 256], strides = [1, 1]} : vector<2x256xf32> to vector<1x256xf32>
    %438 = vector.broadcast %74 : f32 to vector<1x256xf32>
    %439 = arith.mulf %437, %438 : vector<1x256xf32>
    %440 = vector.extract_strided_slice %436 {offsets = [1, 0], sizes = [1, 256], strides = [1, 1]} : vector<2x256xf32> to vector<1x256xf32>
    %441 = vector.broadcast %123 : f32 to vector<1x256xf32>
    %442 = arith.mulf %440, %441 : vector<1x256xf32>
    %443 = arith.addf %439, %442 : vector<1x256xf32>
    %444 = arith.mulf %443, %405 : vector<1x256xf32>
    %445 = arith.addf %394, %444 : vector<1x256xf32>
    %c0_78 = arith.constant 0 : index
    %c144 = arith.constant 144 : index
    %446 = vector.load %arg6[%c0_78, %c144] : memref<2x512xf32, #tpu.memory_space<vmem>>, vector<2x256xf32>
    %447 = vector.extract_strided_slice %446 {offsets = [0, 0], sizes = [1, 256], strides = [1, 1]} : vector<2x256xf32> to vector<1x256xf32>
    %448 = vector.broadcast %81 : f32 to vector<1x256xf32>
    %449 = arith.mulf %447, %448 : vector<1x256xf32>
    %450 = vector.extract_strided_slice %446 {offsets = [1, 0], sizes = [1, 256], strides = [1, 1]} : vector<2x256xf32> to vector<1x256xf32>
    %451 = vector.broadcast %130 : f32 to vector<1x256xf32>
    %452 = arith.mulf %450, %451 : vector<1x256xf32>
    %453 = arith.addf %449, %452 : vector<1x256xf32>
    %454 = arith.mulf %453, %405 : vector<1x256xf32>
    %455 = arith.addf %415, %454 : vector<1x256xf32>
    %c0_79 = arith.constant 0 : index
    %c160 = arith.constant 160 : index
    %456 = vector.load %arg6[%c0_79, %c160] : memref<2x512xf32, #tpu.memory_space<vmem>>, vector<2x256xf32>
    %457 = vector.extract_strided_slice %456 {offsets = [0, 0], sizes = [1, 256], strides = [1, 1]} : vector<2x256xf32> to vector<1x256xf32>
    %458 = vector.broadcast %88 : f32 to vector<1x256xf32>
    %459 = arith.mulf %457, %458 : vector<1x256xf32>
    %460 = vector.extract_strided_slice %456 {offsets = [1, 0], sizes = [1, 256], strides = [1, 1]} : vector<2x256xf32> to vector<1x256xf32>
    %461 = vector.broadcast %137 : f32 to vector<1x256xf32>
    %462 = arith.mulf %460, %461 : vector<1x256xf32>
    %463 = arith.addf %459, %462 : vector<1x256xf32>
    %464 = arith.mulf %463, %405 : vector<1x256xf32>
    %465 = arith.addf %425, %464 : vector<1x256xf32>
    %c0_80 = arith.constant 0 : index
    %c176 = arith.constant 176 : index
    %466 = vector.load %arg6[%c0_80, %c176] : memref<2x512xf32, #tpu.memory_space<vmem>>, vector<2x256xf32>
    %467 = vector.extract_strided_slice %466 {offsets = [0, 0], sizes = [1, 256], strides = [1, 1]} : vector<2x256xf32> to vector<1x256xf32>
    %468 = vector.broadcast %95 : f32 to vector<1x256xf32>
    %469 = arith.mulf %467, %468 : vector<1x256xf32>
    %470 = vector.extract_strided_slice %466 {offsets = [1, 0], sizes = [1, 256], strides = [1, 1]} : vector<2x256xf32> to vector<1x256xf32>
    %471 = vector.broadcast %144 : f32 to vector<1x256xf32>
    %472 = arith.mulf %470, %471 : vector<1x256xf32>
    %473 = arith.addf %469, %472 : vector<1x256xf32>
    %474 = arith.mulf %473, %405 : vector<1x256xf32>
    %475 = arith.addf %435, %474 : vector<1x256xf32>
    %c1_i32_81 = arith.constant 1 : i32
    %476 = vector.broadcast %c1_i32_81 : i32 to vector<1x256xi32>
    %477 = arith.addi %49, %476 : vector<1x256xi32>
    %c0_i32_82 = arith.constant 0 : i32
    %478 = vector.broadcast %c0_i32_82 : i32 to vector<1x256xi32>
    %479 = arith.cmpi sge, %477, %478 : vector<1x256xi32>
    %c1_i32_83 = arith.constant 1 : i32
    %480 = vector.broadcast %c1_i32_83 : i32 to vector<1x256xi32>
    %481 = arith.addi %49, %480 : vector<1x256xi32>
    %c16_i32_84 = arith.constant 16 : i32
    %482 = vector.broadcast %c16_i32_84 : i32 to vector<1x256xi32>
    %483 = arith.cmpi slt, %481, %482 : vector<1x256xi32>
    %484 = arith.andi %479, %483 : vector<1x256xi1>
    %485 = arith.extui %484 : vector<1x256xi1> to vector<1x256xi32>
    %486 = arith.sitofp %485 : vector<1x256xi32> to vector<1x256xf32>
    %c0_85 = arith.constant 0 : index
    %c81_86 = arith.constant 81 : index
    %487 = vector.load %arg6[%c0_85, %c81_86] : memref<2x512xf32, #tpu.memory_space<vmem>>, vector<2x256xf32>
    %488 = vector.extract_strided_slice %487 {offsets = [0, 0], sizes = [1, 256], strides = [1, 1]} : vector<2x256xf32> to vector<1x256xf32>
    %489 = vector.broadcast %54 : f32 to vector<1x256xf32>
    %490 = arith.mulf %488, %489 : vector<1x256xf32>
    %491 = vector.extract_strided_slice %487 {offsets = [1, 0], sizes = [1, 256], strides = [1, 1]} : vector<2x256xf32> to vector<1x256xf32>
    %492 = vector.broadcast %103 : f32 to vector<1x256xf32>
    %493 = arith.mulf %491, %492 : vector<1x256xf32>
    %494 = arith.addf %490, %493 : vector<1x256xf32>
    %495 = arith.mulf %494, %486 : vector<1x256xf32>
    %496 = arith.addf %445, %495 : vector<1x256xf32>
    %c0_87 = arith.constant 0 : index
    %c97_88 = arith.constant 97 : index
    %497 = vector.load %arg6[%c0_87, %c97_88] : memref<2x512xf32, #tpu.memory_space<vmem>>, vector<2x256xf32>
    %498 = vector.extract_strided_slice %497 {offsets = [0, 0], sizes = [1, 256], strides = [1, 1]} : vector<2x256xf32> to vector<1x256xf32>
    %499 = vector.broadcast %61 : f32 to vector<1x256xf32>
    %500 = arith.mulf %498, %499 : vector<1x256xf32>
    %501 = vector.extract_strided_slice %497 {offsets = [1, 0], sizes = [1, 256], strides = [1, 1]} : vector<2x256xf32> to vector<1x256xf32>
    %502 = vector.broadcast %110 : f32 to vector<1x256xf32>
    %503 = arith.mulf %501, %502 : vector<1x256xf32>
    %504 = arith.addf %500, %503 : vector<1x256xf32>
    %505 = arith.mulf %504, %486 : vector<1x256xf32>
    %506 = arith.addf %455, %505 : vector<1x256xf32>
    %c0_89 = arith.constant 0 : index
    %c113 = arith.constant 113 : index
    %507 = vector.load %arg6[%c0_89, %c113] : memref<2x512xf32, #tpu.memory_space<vmem>>, vector<2x256xf32>
    %508 = vector.extract_strided_slice %507 {offsets = [0, 0], sizes = [1, 256], strides = [1, 1]} : vector<2x256xf32> to vector<1x256xf32>
    %509 = vector.broadcast %68 : f32 to vector<1x256xf32>
    %510 = arith.mulf %508, %509 : vector<1x256xf32>
    %511 = vector.extract_strided_slice %507 {offsets = [1, 0], sizes = [1, 256], strides = [1, 1]} : vector<2x256xf32> to vector<1x256xf32>
    %512 = vector.broadcast %117 : f32 to vector<1x256xf32>
    %513 = arith.mulf %511, %512 : vector<1x256xf32>
    %514 = arith.addf %510, %513 : vector<1x256xf32>
    %515 = arith.mulf %514, %486 : vector<1x256xf32>
    %516 = arith.addf %465, %515 : vector<1x256xf32>
    %c0_90 = arith.constant 0 : index
    %c129 = arith.constant 129 : index
    %517 = vector.load %arg6[%c0_90, %c129] : memref<2x512xf32, #tpu.memory_space<vmem>>, vector<2x256xf32>
    %518 = vector.extract_strided_slice %517 {offsets = [0, 0], sizes = [1, 256], strides = [1, 1]} : vector<2x256xf32> to vector<1x256xf32>
    %519 = vector.broadcast %75 : f32 to vector<1x256xf32>
    %520 = arith.mulf %518, %519 : vector<1x256xf32>
    %521 = vector.extract_strided_slice %517 {offsets = [1, 0], sizes = [1, 256], strides = [1, 1]} : vector<2x256xf32> to vector<1x256xf32>
    %522 = vector.broadcast %124 : f32 to vector<1x256xf32>
    %523 = arith.mulf %521, %522 : vector<1x256xf32>
    %524 = arith.addf %520, %523 : vector<1x256xf32>
    %525 = arith.mulf %524, %486 : vector<1x256xf32>
    %526 = arith.addf %475, %525 : vector<1x256xf32>
    %c0_91 = arith.constant 0 : index
    %c145 = arith.constant 145 : index
    %527 = vector.load %arg6[%c0_91, %c145] : memref<2x512xf32, #tpu.memory_space<vmem>>, vector<2x256xf32>
    %528 = vector.extract_strided_slice %527 {offsets = [0, 0], sizes = [1, 256], strides = [1, 1]} : vector<2x256xf32> to vector<1x256xf32>
    %529 = vector.broadcast %82 : f32 to vector<1x256xf32>
    %530 = arith.mulf %528, %529 : vector<1x256xf32>
    %531 = vector.extract_strided_slice %527 {offsets = [1, 0], sizes = [1, 256], strides = [1, 1]} : vector<2x256xf32> to vector<1x256xf32>
    %532 = vector.broadcast %131 : f32 to vector<1x256xf32>
    %533 = arith.mulf %531, %532 : vector<1x256xf32>
    %534 = arith.addf %530, %533 : vector<1x256xf32>
    %535 = arith.mulf %534, %486 : vector<1x256xf32>
    %536 = arith.addf %496, %535 : vector<1x256xf32>
    %c0_92 = arith.constant 0 : index
    %c161 = arith.constant 161 : index
    %537 = vector.load %arg6[%c0_92, %c161] : memref<2x512xf32, #tpu.memory_space<vmem>>, vector<2x256xf32>
    %538 = vector.extract_strided_slice %537 {offsets = [0, 0], sizes = [1, 256], strides = [1, 1]} : vector<2x256xf32> to vector<1x256xf32>
    %539 = vector.broadcast %89 : f32 to vector<1x256xf32>
    %540 = arith.mulf %538, %539 : vector<1x256xf32>
    %541 = vector.extract_strided_slice %537 {offsets = [1, 0], sizes = [1, 256], strides = [1, 1]} : vector<2x256xf32> to vector<1x256xf32>
    %542 = vector.broadcast %138 : f32 to vector<1x256xf32>
    %543 = arith.mulf %541, %542 : vector<1x256xf32>
    %544 = arith.addf %540, %543 : vector<1x256xf32>
    %545 = arith.mulf %544, %486 : vector<1x256xf32>
    %546 = arith.addf %506, %545 : vector<1x256xf32>
    %c0_93 = arith.constant 0 : index
    %c177 = arith.constant 177 : index
    %547 = vector.load %arg6[%c0_93, %c177] : memref<2x512xf32, #tpu.memory_space<vmem>>, vector<2x256xf32>
    %548 = vector.extract_strided_slice %547 {offsets = [0, 0], sizes = [1, 256], strides = [1, 1]} : vector<2x256xf32> to vector<1x256xf32>
    %549 = vector.broadcast %96 : f32 to vector<1x256xf32>
    %550 = arith.mulf %548, %549 : vector<1x256xf32>
    %551 = vector.extract_strided_slice %547 {offsets = [1, 0], sizes = [1, 256], strides = [1, 1]} : vector<2x256xf32> to vector<1x256xf32>
    %552 = vector.broadcast %145 : f32 to vector<1x256xf32>
    %553 = arith.mulf %551, %552 : vector<1x256xf32>
    %554 = arith.addf %550, %553 : vector<1x256xf32>
    %555 = arith.mulf %554, %486 : vector<1x256xf32>
    %556 = arith.addf %516, %555 : vector<1x256xf32>
    %c2_i32 = arith.constant 2 : i32
    %557 = vector.broadcast %c2_i32 : i32 to vector<1x256xi32>
    %558 = arith.addi %49, %557 : vector<1x256xi32>
    %c0_i32_94 = arith.constant 0 : i32
    %559 = vector.broadcast %c0_i32_94 : i32 to vector<1x256xi32>
    %560 = arith.cmpi sge, %558, %559 : vector<1x256xi32>
    %c2_i32_95 = arith.constant 2 : i32
    %561 = vector.broadcast %c2_i32_95 : i32 to vector<1x256xi32>
    %562 = arith.addi %49, %561 : vector<1x256xi32>
    %c16_i32_96 = arith.constant 16 : i32
    %563 = vector.broadcast %c16_i32_96 : i32 to vector<1x256xi32>
    %564 = arith.cmpi slt, %562, %563 : vector<1x256xi32>
    %565 = arith.andi %560, %564 : vector<1x256xi1>
    %566 = arith.extui %565 : vector<1x256xi1> to vector<1x256xi32>
    %567 = arith.sitofp %566 : vector<1x256xi32> to vector<1x256xf32>
    %c0_97 = arith.constant 0 : index
    %c82_98 = arith.constant 82 : index
    %568 = vector.load %arg6[%c0_97, %c82_98] : memref<2x512xf32, #tpu.memory_space<vmem>>, vector<2x256xf32>
    %569 = vector.extract_strided_slice %568 {offsets = [0, 0], sizes = [1, 256], strides = [1, 1]} : vector<2x256xf32> to vector<1x256xf32>
    %570 = vector.broadcast %55 : f32 to vector<1x256xf32>
    %571 = arith.mulf %569, %570 : vector<1x256xf32>
    %572 = vector.extract_strided_slice %568 {offsets = [1, 0], sizes = [1, 256], strides = [1, 1]} : vector<2x256xf32> to vector<1x256xf32>
    %573 = vector.broadcast %104 : f32 to vector<1x256xf32>
    %574 = arith.mulf %572, %573 : vector<1x256xf32>
    %575 = arith.addf %571, %574 : vector<1x256xf32>
    %576 = arith.mulf %575, %567 : vector<1x256xf32>
    %577 = arith.addf %526, %576 : vector<1x256xf32>
    %c0_99 = arith.constant 0 : index
    %c98 = arith.constant 98 : index
    %578 = vector.load %arg6[%c0_99, %c98] : memref<2x512xf32, #tpu.memory_space<vmem>>, vector<2x256xf32>
    %579 = vector.extract_strided_slice %578 {offsets = [0, 0], sizes = [1, 256], strides = [1, 1]} : vector<2x256xf32> to vector<1x256xf32>
    %580 = vector.broadcast %62 : f32 to vector<1x256xf32>
    %581 = arith.mulf %579, %580 : vector<1x256xf32>
    %582 = vector.extract_strided_slice %578 {offsets = [1, 0], sizes = [1, 256], strides = [1, 1]} : vector<2x256xf32> to vector<1x256xf32>
    %583 = vector.broadcast %111 : f32 to vector<1x256xf32>
    %584 = arith.mulf %582, %583 : vector<1x256xf32>
    %585 = arith.addf %581, %584 : vector<1x256xf32>
    %586 = arith.mulf %585, %567 : vector<1x256xf32>
    %587 = arith.addf %536, %586 : vector<1x256xf32>
    %c0_100 = arith.constant 0 : index
    %c114 = arith.constant 114 : index
    %588 = vector.load %arg6[%c0_100, %c114] : memref<2x512xf32, #tpu.memory_space<vmem>>, vector<2x256xf32>
    %589 = vector.extract_strided_slice %588 {offsets = [0, 0], sizes = [1, 256], strides = [1, 1]} : vector<2x256xf32> to vector<1x256xf32>
    %590 = vector.broadcast %69 : f32 to vector<1x256xf32>
    %591 = arith.mulf %589, %590 : vector<1x256xf32>
    %592 = vector.extract_strided_slice %588 {offsets = [1, 0], sizes = [1, 256], strides = [1, 1]} : vector<2x256xf32> to vector<1x256xf32>
    %593 = vector.broadcast %118 : f32 to vector<1x256xf32>
    %594 = arith.mulf %592, %593 : vector<1x256xf32>
    %595 = arith.addf %591, %594 : vector<1x256xf32>
    %596 = arith.mulf %595, %567 : vector<1x256xf32>
    %597 = arith.addf %546, %596 : vector<1x256xf32>
    %c0_101 = arith.constant 0 : index
    %c130 = arith.constant 130 : index
    %598 = vector.load %arg6[%c0_101, %c130] : memref<2x512xf32, #tpu.memory_space<vmem>>, vector<2x256xf32>
    %599 = vector.extract_strided_slice %598 {offsets = [0, 0], sizes = [1, 256], strides = [1, 1]} : vector<2x256xf32> to vector<1x256xf32>
    %600 = vector.broadcast %76 : f32 to vector<1x256xf32>
    %601 = arith.mulf %599, %600 : vector<1x256xf32>
    %602 = vector.extract_strided_slice %598 {offsets = [1, 0], sizes = [1, 256], strides = [1, 1]} : vector<2x256xf32> to vector<1x256xf32>
    %603 = vector.broadcast %125 : f32 to vector<1x256xf32>
    %604 = arith.mulf %602, %603 : vector<1x256xf32>
    %605 = arith.addf %601, %604 : vector<1x256xf32>
    %606 = arith.mulf %605, %567 : vector<1x256xf32>
    %607 = arith.addf %556, %606 : vector<1x256xf32>
    %c0_102 = arith.constant 0 : index
    %c146 = arith.constant 146 : index
    %608 = vector.load %arg6[%c0_102, %c146] : memref<2x512xf32, #tpu.memory_space<vmem>>, vector<2x256xf32>
    %609 = vector.extract_strided_slice %608 {offsets = [0, 0], sizes = [1, 256], strides = [1, 1]} : vector<2x256xf32> to vector<1x256xf32>
    %610 = vector.broadcast %83 : f32 to vector<1x256xf32>
    %611 = arith.mulf %609, %610 : vector<1x256xf32>
    %612 = vector.extract_strided_slice %608 {offsets = [1, 0], sizes = [1, 256], strides = [1, 1]} : vector<2x256xf32> to vector<1x256xf32>
    %613 = vector.broadcast %132 : f32 to vector<1x256xf32>
    %614 = arith.mulf %612, %613 : vector<1x256xf32>
    %615 = arith.addf %611, %614 : vector<1x256xf32>
    %616 = arith.mulf %615, %567 : vector<1x256xf32>
    %617 = arith.addf %577, %616 : vector<1x256xf32>
    %c0_103 = arith.constant 0 : index
    %c162 = arith.constant 162 : index
    %618 = vector.load %arg6[%c0_103, %c162] : memref<2x512xf32, #tpu.memory_space<vmem>>, vector<2x256xf32>
    %619 = vector.extract_strided_slice %618 {offsets = [0, 0], sizes = [1, 256], strides = [1, 1]} : vector<2x256xf32> to vector<1x256xf32>
    %620 = vector.broadcast %90 : f32 to vector<1x256xf32>
    %621 = arith.mulf %619, %620 : vector<1x256xf32>
    %622 = vector.extract_strided_slice %618 {offsets = [1, 0], sizes = [1, 256], strides = [1, 1]} : vector<2x256xf32> to vector<1x256xf32>
    %623 = vector.broadcast %139 : f32 to vector<1x256xf32>
    %624 = arith.mulf %622, %623 : vector<1x256xf32>
    %625 = arith.addf %621, %624 : vector<1x256xf32>
    %626 = arith.mulf %625, %567 : vector<1x256xf32>
    %627 = arith.addf %587, %626 : vector<1x256xf32>
    %c0_104 = arith.constant 0 : index
    %c178 = arith.constant 178 : index
    %628 = vector.load %arg6[%c0_104, %c178] : memref<2x512xf32, #tpu.memory_space<vmem>>, vector<2x256xf32>
    %629 = vector.extract_strided_slice %628 {offsets = [0, 0], sizes = [1, 256], strides = [1, 1]} : vector<2x256xf32> to vector<1x256xf32>
    %630 = vector.broadcast %97 : f32 to vector<1x256xf32>
    %631 = arith.mulf %629, %630 : vector<1x256xf32>
    %632 = vector.extract_strided_slice %628 {offsets = [1, 0], sizes = [1, 256], strides = [1, 1]} : vector<2x256xf32> to vector<1x256xf32>
    %633 = vector.broadcast %146 : f32 to vector<1x256xf32>
    %634 = arith.mulf %632, %633 : vector<1x256xf32>
    %635 = arith.addf %631, %634 : vector<1x256xf32>
    %636 = arith.mulf %635, %567 : vector<1x256xf32>
    %637 = arith.addf %597, %636 : vector<1x256xf32>
    %c3_i32 = arith.constant 3 : i32
    %638 = vector.broadcast %c3_i32 : i32 to vector<1x256xi32>
    %639 = arith.addi %49, %638 : vector<1x256xi32>
    %c0_i32_105 = arith.constant 0 : i32
    %640 = vector.broadcast %c0_i32_105 : i32 to vector<1x256xi32>
    %641 = arith.cmpi sge, %639, %640 : vector<1x256xi32>
    %c3_i32_106 = arith.constant 3 : i32
    %642 = vector.broadcast %c3_i32_106 : i32 to vector<1x256xi32>
    %643 = arith.addi %49, %642 : vector<1x256xi32>
    %c16_i32_107 = arith.constant 16 : i32
    %644 = vector.broadcast %c16_i32_107 : i32 to vector<1x256xi32>
    %645 = arith.cmpi slt, %643, %644 : vector<1x256xi32>
    %646 = arith.andi %641, %645 : vector<1x256xi1>
    %647 = arith.extui %646 : vector<1x256xi1> to vector<1x256xi32>
    %648 = arith.sitofp %647 : vector<1x256xi32> to vector<1x256xf32>
    %c0_108 = arith.constant 0 : index
    %c83_109 = arith.constant 83 : index
    %649 = vector.load %arg6[%c0_108, %c83_109] : memref<2x512xf32, #tpu.memory_space<vmem>>, vector<2x256xf32>
    %650 = vector.extract_strided_slice %649 {offsets = [0, 0], sizes = [1, 256], strides = [1, 1]} : vector<2x256xf32> to vector<1x256xf32>
    %651 = vector.broadcast %56 : f32 to vector<1x256xf32>
    %652 = arith.mulf %650, %651 : vector<1x256xf32>
    %653 = vector.extract_strided_slice %649 {offsets = [1, 0], sizes = [1, 256], strides = [1, 1]} : vector<2x256xf32> to vector<1x256xf32>
    %654 = vector.broadcast %105 : f32 to vector<1x256xf32>
    %655 = arith.mulf %653, %654 : vector<1x256xf32>
    %656 = arith.addf %652, %655 : vector<1x256xf32>
    %657 = arith.mulf %656, %648 : vector<1x256xf32>
    %658 = arith.addf %607, %657 : vector<1x256xf32>
    %c0_110 = arith.constant 0 : index
    %c99 = arith.constant 99 : index
    %659 = vector.load %arg6[%c0_110, %c99] : memref<2x512xf32, #tpu.memory_space<vmem>>, vector<2x256xf32>
    %660 = vector.extract_strided_slice %659 {offsets = [0, 0], sizes = [1, 256], strides = [1, 1]} : vector<2x256xf32> to vector<1x256xf32>
    %661 = vector.broadcast %63 : f32 to vector<1x256xf32>
    %662 = arith.mulf %660, %661 : vector<1x256xf32>
    %663 = vector.extract_strided_slice %659 {offsets = [1, 0], sizes = [1, 256], strides = [1, 1]} : vector<2x256xf32> to vector<1x256xf32>
    %664 = vector.broadcast %112 : f32 to vector<1x256xf32>
    %665 = arith.mulf %663, %664 : vector<1x256xf32>
    %666 = arith.addf %662, %665 : vector<1x256xf32>
    %667 = arith.mulf %666, %648 : vector<1x256xf32>
    %668 = arith.addf %617, %667 : vector<1x256xf32>
    %c0_111 = arith.constant 0 : index
    %c115 = arith.constant 115 : index
    %669 = vector.load %arg6[%c0_111, %c115] : memref<2x512xf32, #tpu.memory_space<vmem>>, vector<2x256xf32>
    %670 = vector.extract_strided_slice %669 {offsets = [0, 0], sizes = [1, 256], strides = [1, 1]} : vector<2x256xf32> to vector<1x256xf32>
    %671 = vector.broadcast %70 : f32 to vector<1x256xf32>
    %672 = arith.mulf %670, %671 : vector<1x256xf32>
    %673 = vector.extract_strided_slice %669 {offsets = [1, 0], sizes = [1, 256], strides = [1, 1]} : vector<2x256xf32> to vector<1x256xf32>
    %674 = vector.broadcast %119 : f32 to vector<1x256xf32>
    %675 = arith.mulf %673, %674 : vector<1x256xf32>
    %676 = arith.addf %672, %675 : vector<1x256xf32>
    %677 = arith.mulf %676, %648 : vector<1x256xf32>
    %678 = arith.addf %627, %677 : vector<1x256xf32>
    %c0_112 = arith.constant 0 : index
    %c131 = arith.constant 131 : index
    %679 = vector.load %arg6[%c0_112, %c131] : memref<2x512xf32, #tpu.memory_space<vmem>>, vector<2x256xf32>
    %680 = vector.extract_strided_slice %679 {offsets = [0, 0], sizes = [1, 256], strides = [1, 1]} : vector<2x256xf32> to vector<1x256xf32>
    %681 = vector.broadcast %77 : f32 to vector<1x256xf32>
    %682 = arith.mulf %680, %681 : vector<1x256xf32>
    %683 = vector.extract_strided_slice %679 {offsets = [1, 0], sizes = [1, 256], strides = [1, 1]} : vector<2x256xf32> to vector<1x256xf32>
    %684 = vector.broadcast %126 : f32 to vector<1x256xf32>
    %685 = arith.mulf %683, %684 : vector<1x256xf32>
    %686 = arith.addf %682, %685 : vector<1x256xf32>
    %687 = arith.mulf %686, %648 : vector<1x256xf32>
    %688 = arith.addf %637, %687 : vector<1x256xf32>
    %c0_113 = arith.constant 0 : index
    %c147 = arith.constant 147 : index
    %689 = vector.load %arg6[%c0_113, %c147] : memref<2x512xf32, #tpu.memory_space<vmem>>, vector<2x256xf32>
    %690 = vector.extract_strided_slice %689 {offsets = [0, 0], sizes = [1, 256], strides = [1, 1]} : vector<2x256xf32> to vector<1x256xf32>
    %691 = vector.broadcast %84 : f32 to vector<1x256xf32>
    %692 = arith.mulf %690, %691 : vector<1x256xf32>
    %693 = vector.extract_strided_slice %689 {offsets = [1, 0], sizes = [1, 256], strides = [1, 1]} : vector<2x256xf32> to vector<1x256xf32>
    %694 = vector.broadcast %133 : f32 to vector<1x256xf32>
    %695 = arith.mulf %693, %694 : vector<1x256xf32>
    %696 = arith.addf %692, %695 : vector<1x256xf32>
    %697 = arith.mulf %696, %648 : vector<1x256xf32>
    %698 = arith.addf %658, %697 : vector<1x256xf32>
    %c0_114 = arith.constant 0 : index
    %c163 = arith.constant 163 : index
    %699 = vector.load %arg6[%c0_114, %c163] : memref<2x512xf32, #tpu.memory_space<vmem>>, vector<2x256xf32>
    %700 = vector.extract_strided_slice %699 {offsets = [0, 0], sizes = [1, 256], strides = [1, 1]} : vector<2x256xf32> to vector<1x256xf32>
    %701 = vector.broadcast %91 : f32 to vector<1x256xf32>
    %702 = arith.mulf %700, %701 : vector<1x256xf32>
    %703 = vector.extract_strided_slice %699 {offsets = [1, 0], sizes = [1, 256], strides = [1, 1]} : vector<2x256xf32> to vector<1x256xf32>
    %704 = vector.broadcast %140 : f32 to vector<1x256xf32>
    %705 = arith.mulf %703, %704 : vector<1x256xf32>
    %706 = arith.addf %702, %705 : vector<1x256xf32>
    %707 = arith.mulf %706, %648 : vector<1x256xf32>
    %708 = arith.addf %668, %707 : vector<1x256xf32>
    %c0_115 = arith.constant 0 : index
    %c179 = arith.constant 179 : index
    %709 = vector.load %arg6[%c0_115, %c179] : memref<2x512xf32, #tpu.memory_space<vmem>>, vector<2x256xf32>
    %710 = vector.extract_strided_slice %709 {offsets = [0, 0], sizes = [1, 256], strides = [1, 1]} : vector<2x256xf32> to vector<1x256xf32>
    %711 = vector.broadcast %98 : f32 to vector<1x256xf32>
    %712 = arith.mulf %710, %711 : vector<1x256xf32>
    %713 = vector.extract_strided_slice %709 {offsets = [1, 0], sizes = [1, 256], strides = [1, 1]} : vector<2x256xf32> to vector<1x256xf32>
    %714 = vector.broadcast %147 : f32 to vector<1x256xf32>
    %715 = arith.mulf %713, %714 : vector<1x256xf32>
    %716 = arith.addf %712, %715 : vector<1x256xf32>
    %717 = arith.mulf %716, %648 : vector<1x256xf32>
    %718 = arith.addf %678, %717 : vector<1x256xf32>
    %719 = arith.addf %718, %688 : vector<1x256xf32>
    %720 = arith.addf %719, %698 : vector<1x256xf32>
    %721 = arith.addf %720, %708 : vector<1x256xf32>
    %722 = arith.negf %721 : vector<1x256xf32>
    %723 = math.exp %722 : vector<1x256xf32>
    %cst_116 = arith.constant 1.000000e+00 : f32
    %724 = vector.broadcast %cst_116 : f32 to vector<1x256xf32>
    %725 = arith.addf %724, %723 : vector<1x256xf32>
    %726 = arith.divf %724, %725 : vector<1x256xf32>
    %727 = vector.shape_cast %726 : vector<1x256xf32> to vector<1x1x256xf32>
    %728 = vector.broadcast %727 : vector<1x1x256xf32> to vector<1x32x256xf32>
    %729 = arith.mulf %22, %728 : vector<1x32x256xf32>
    %c0_117 = arith.constant 0 : index
    %c0_118 = arith.constant 0 : index
    %c0_119 = arith.constant 0 : index
    %730 = vector.load %arg5[%c0_117, %c0_118, %c0_119] : memref<1x32x256xf32, #tpu.memory_space<vmem>>, vector<1x32x256xf32>
    tpu.vector_store %arg5[%c0_117, %c0_118, %c0_119], %729 {strides = array<i32>} : memref<1x32x256xf32, #tpu.memory_space<vmem>>, vector<1x32x256xf32>,
    return
  }
  func.func @transform_0(%arg0: i32) -> (i32, i32, i32) {
    %c0_i32 = arith.constant 0 : i32
    %c0_i32_0 = arith.constant 0 : i32
    %c0_i32_1 = arith.constant 0 : i32
    return %arg0, %c0_i32, %c0_i32_0 : i32, i32, i32
  }
  func.func @transform_1(%arg0: i32) -> (i32, i32) {
    %c0_i32 = arith.constant 0 : i32
    %c0_i32_0 = arith.constant 0 : i32
    %c0_i32_1 = arith.constant 0 : i32
    return %c0_i32, %c0_i32_0 : i32, i32
  }
  func.func @transform_2(%arg0: i32) -> (i32, i32) {
    %c0_i32 = arith.constant 0 : i32
    %c0_i32_0 = arith.constant 0 : i32
    %c0_i32_1 = arith.constant 0 : i32
    return %c0_i32, %c0_i32_0 : i32, i32
  }
  func.func @transform_3(%arg0: i32) -> i32 {
    %c0_i32 = arith.constant 0 : i32
    %c0_i32_0 = arith.constant 0 : i32
    return %c0_i32 : i32
  }
  func.func @transform_4(%arg0: i32) -> (i32, i32, i32) {
    %c0_i32 = arith.constant 0 : i32
    %c0_i32_0 = arith.constant 0 : i32
    %c0_i32_1 = arith.constant 0 : i32
    return %arg0, %c0_i32, %c0_i32_0 : i32, i32, i32
  }
}

</mosaic_0001>

<llo_original>
// kernel: tpu_custom_call.1
$region0: #{tpu_custom_call.1}
  #allocation0 [shape = 'u32[]', space=smem, size = 0x4, offset = 0x4, fixed_abs, tag = 'smem constant byte address 0x4 - core index']
  #allocation1 [shape = 'u32[144,128]{1,0:T(1,128)}', space=vmem, size = 0x12000, scoped, tag = 'internal scratch']
  #allocation2 [shape = 'f32[2,512]{1,0:T(2,128)}', space=vmem, size = 0x1000, scoped, tag = 'scratch operand']
  %s0 = inlined_call_operand.vmem [shape: f32[2,32,256], index: 0, kind: input, shape index: {}]
  %s1 = inlined_call_operand.vmem [shape: f32[32,128], index: 1, kind: input, shape index: {}]
  %s2 = inlined_call_operand.vmem [shape: f32[128,32], index: 2, kind: input, shape index: {}]
  %s3 = inlined_call_operand.vmem [shape: f32[98], index: 3, kind: input, shape index: {}]
  %s4 = inlined_call_operand.hbm [shape: f32[2,32,256], index: 4, kind: output, shape index: {}]
  %s5 = sld [smem:[#allocation0]]
  $region53: #{tpu_custom_call.1} parent=0
    _
  %s7 = ssub.s32 1, %s5
  %s8 = scalar_select 0, %s7, %s5
  $region1: #{tpu_custom_call.1} parent=0
    #allocation3 [shape = 'u8[512]{0}', space=smem, size = 0x200, scoped, tag = 'input window, operand 3, single buffered']
    #allocation4 [shape = 's32[2]{0}', space=sflag, size = 0x8, scoped, tag = 'scoped memory for tpu_custom_call.1']
    #allocation5 [shape = 's32[2]{0}', space=sflag, size = 0x8, scoped, tag = 'scoped memory for tpu_custom_call.1']
    #allocation6 [shape = 'u8[65536]{0}', space=vmem, size = 0x10000, scoped, tag = 'output window, operand 0']
    %9 = vsyncpa [#allocation5], 0
    %10 = vsyncpa [#allocation4], 0
    %s11 = scalar_lea.sflag [#allocation4], 1
    %12 = vsyncpa %s11, 0
    loop: start=0, step=1, limit=4
    $region2: #{tpu_custom_call.1} parent=1 // loop_pre_header
      _
    $region3: #{tpu_custom_call.1} parent=1 // loop_header
      %s14 = sphi 0, %s18
      %p15 = scmp.ge.s32.totalorder %s14, 4
      %s24 = sphi 0, %s26
      %s27 = sphi 0, %s24
      %s28 = sphi 0, %s27
      %s44 = sphi 0, %s28
      %s48 = sphi 0, %s48
      %s50 = sphi 0, %s48
      %s51 = sphi 0, %s50
      %s65 = sphi 0, %s51
      %s69 = sphi 0, %s69
      %s71 = sphi 0, %s69
      %s72 = sphi 0, %s71
      %s86 = sphi 0, %s72
      %s90 = sphi 0, %s90
      %s92 = sphi 0, %s90
      %s93 = sphi 0, %s92
      %s107 = sphi 0, %s93
      %s113 = sphi 0, %s115
      %s116 = sphi 0, %s113
      %s117 = sphi 0, %s116
      %s133 = sphi 0, %s117
    $region4: #{tpu_custom_call.1} parent=1 // loop_header_branch
      %17 = sbr.rel (%p15) target = $region8
    $region5: #{tpu_custom_call.1} parent=1 // loop_body
      %s19 = ssub.s32 %s14, 1
      %s20 = ssub.s32 %s14, 2
      %s21 = sadd.s32 %s14, 1
      %s22 = ssub.s32 %s14, %s21
      %p23 = scmp.eq.s32.totalorder %s22, 0
      %s25 = sadd.s32 %s24, 1
      %s26 = scalar_select %p23, %s24, %s25
      %p29 = pneg %p23
      %p30 = scmp.eq.s32.totalorder %s14, 1
      %p31 = por %p29, %p30
      %p32 = scmp.ne.s32.totalorder %s24, %s27
      %p33 = scmp.eq.s32.totalorder %s14, 0
      %p34 = por %p32, %p33
      %p35 = scmp.ne.s32.totalorder %s24, %s27
      %p36 = scmp.eq.s32.totalorder %s19, 1
      %p37 = por %p35, %p36
      %p38 = scmp.ne.s32.totalorder %s27, %s28
      %p39 = scmp.eq.s32.totalorder %s19, 0
      %p40 = por %p38, %p39
      %p41 = scmp.ne.s32.totalorder %s27, %s28
      %p42 = scmp.eq.s32.totalorder %s20, 1
      %p43 = por %p41, %p42
      %p45 = scmp.ne.s32.totalorder %s28, %s44
      %p46 = scmp.eq.s32.totalorder %s20, 0
      %p47 = por %p45, %p46
      %s49 = sadd.s32 %s48, 1
      %p52 = scmp.eq.s32.totalorder %s14, 1
      %p53 = scmp.ne.s32.totalorder %s48, %s50
      %p54 = scmp.eq.s32.totalorder %s14, 0
      %p55 = por %p53, %p54
      %p56 = scmp.ne.s32.totalorder %s48, %s50
      %p57 = scmp.eq.s32.totalorder %s19, 1
      %p58 = por %p56, %p57
      %p59 = scmp.ne.s32.totalorder %s50, %s51
      %p60 = scmp.eq.s32.totalorder %s19, 0
      %p61 = por %p59, %p60
      %p62 = scmp.ne.s32.totalorder %s50, %s51
      %p63 = scmp.eq.s32.totalorder %s20, 1
      %p64 = por %p62, %p63
      %p66 = scmp.ne.s32.totalorder %s51, %s65
      %p67 = scmp.eq.s32.totalorder %s20, 0
      %p68 = por %p66, %p67
      %s70 = sadd.s32 %s69, 1
      %p73 = scmp.eq.s32.totalorder %s14, 1
      %p74 = scmp.ne.s32.totalorder %s69, %s71
      %p75 = scmp.eq.s32.totalorder %s14, 0
      %p76 = por %p74, %p75
      %p77 = scmp.ne.s32.totalorder %s69, %s71
      %p78 = scmp.eq.s32.totalorder %s19, 1
      %p79 = por %p77, %p78
      %p80 = scmp.ne.s32.totalorder %s71, %s72
      %p81 = scmp.eq.s32.totalorder %s19, 0
      %p82 = por %p80, %p81
      %p83 = scmp.ne.s32.totalorder %s71, %s72
      %p84 = scmp.eq.s32.totalorder %s20, 1
      %p85 = por %p83, %p84
      %p87 = scmp.ne.s32.totalorder %s72, %s86
      %p88 = scmp.eq.s32.totalorder %s20, 0
      %p89 = por %p87, %p88
      %s91 = sadd.s32 %s90, 1
      %p94 = scmp.eq.s32.totalorder %s14, 1
      %p95 = scmp.ne.s32.totalorder %s90, %s92
      %p96 = scmp.eq.s32.totalorder %s14, 0
      %p97 = por %p95, %p96
      %p98 = scmp.ne.s32.totalorder %s90, %s92
      %p99 = scmp.eq.s32.totalorder %s19, 1
      %p100 = por %p98, %p99
      %p101 = scmp.ne.s32.totalorder %s92, %s93
      %p102 = scmp.eq.s32.totalorder %s19, 0
      %p103 = por %p101, %p102
      %p104 = scmp.ne.s32.totalorder %s92, %s93
      %p105 = scmp.eq.s32.totalorder %s20, 1
      %p106 = por %p104, %p105
      %p108 = scmp.ne.s32.totalorder %s93, %s107
      %p109 = scmp.eq.s32.totalorder %s20, 0
      %p110 = por %p108, %p109
      %s111 = ssub.s32 %s14, %s21
      %p112 = scmp.eq.s32.totalorder %s111, 0
      %s114 = sadd.s32 %s113, 1
      %s115 = scalar_select %p112, %s113, %s114
      %p118 = pneg %p112
      %p119 = scmp.eq.s32.totalorder %s14, 1
      %p120 = por %p118, %p119
      %p121 = scmp.ne.s32.totalorder %s113, %s116
      %p122 = scmp.eq.s32.totalorder %s14, 0
      %p123 = por %p121, %p122
      %p124 = scmp.ne.s32.totalorder %s113, %s116
      %p125 = scmp.eq.s32.totalorder %s19, 1
      %p126 = por %p124, %p125
      %p127 = scmp.ne.s32.totalorder %s116, %s117
      %p128 = scmp.eq.s32.totalorder %s19, 0
      %p129 = por %p127, %p128
      %p130 = scmp.ne.s32.totalorder %s116, %s117
      %p131 = scmp.eq.s32.totalorder %s20, 1
      %p132 = por %p130, %p131
      %p134 = scmp.ne.s32.totalorder %s117, %s133
      %p135 = scmp.eq.s32.totalorder %s20, 0
      %p136 = por %p134, %p135
      %p137 = scmp.le.s32.totalorder 1, %s14
      %p138 = scmp.lt.s32.totalorder %s14, 3
      %p139 = pnand %p137, %p138
      %p140 = pneg %p139
      // Predicated region
      $region9: #{tpu_custom_call.1} parent=5 // pred_check
        _
      $region10: #{tpu_custom_call.1} parent=5 // pred_check_branch
        %142 = sbr.rel (%p139) target = $region12
      $region11: #{tpu_custom_call.1} parent=5 // pred_region
        %s143 = ssub.s32 %s14, 1
        // Predicated region
        $region13: #{tpu_custom_call.1} parent=11 // pred_check
          %p144 = pneg %p61
        $region14: #{tpu_custom_call.1} parent=11 // pred_check_branch
          %146 = sbr.rel (%p144) target = $region16
        $region15: #{tpu_custom_call.1} parent=11 // pred_region
          _
        $region16: #{tpu_custom_call.1} parent=11 // pred_fallthru
          _
        // Predicated region
        $region17: #{tpu_custom_call.1} parent=11 // pred_check
          %p147 = pneg %p82
        $region18: #{tpu_custom_call.1} parent=11 // pred_check_branch
          %149 = sbr.rel (%p147) target = $region20
        $region19: #{tpu_custom_call.1} parent=11 // pred_region
          _
        $region20: #{tpu_custom_call.1} parent=11 // pred_fallthru
          _
        // Predicated region
        $region21: #{tpu_custom_call.1} parent=11 // pred_check
          %p150 = pneg %p103
        $region22: #{tpu_custom_call.1} parent=11 // pred_check_branch
          %152 = sbr.rel (%p150) target = $region24
        $region23: #{tpu_custom_call.1} parent=11 // pred_region
          %s154 = ssub.s32 16, 16
          %155 = vsyncadd [#allocation5], %s154
          %s157 = sshll.u32 %s3, 4
          %s158 = int_to_ptr.vmem [resolvable:$true] %s157
          %160 = dma.vmem_to_smem %s158, 16, [#allocation3], [#allocation5]
        $region24: #{tpu_custom_call.1} parent=11 // pred_fallthru
          _
      $region12: #{tpu_custom_call.1} parent=5 // pred_fallthru
        _
      %p161 = scmp.lt.s32.totalorder %s14, 2
      // Predicated region
      $region25: #{tpu_custom_call.1} parent=5 // pred_check
        %p162 = pneg %p161
      $region26: #{tpu_custom_call.1} parent=5 // pred_check_branch
        %164 = sbr.rel (%p162) target = $region28
      $region27: #{tpu_custom_call.1} parent=5 // pred_region
        // Predicated region
        $region29: #{tpu_custom_call.1} parent=27 // pred_check
          %p165 = pneg %p34
        $region30: #{tpu_custom_call.1} parent=27 // pred_check_branch
          %167 = sbr.rel (%p165) target = $region32
        $region31: #{tpu_custom_call.1} parent=27 // pred_region
          %p168 = scmp.lt.s32.totalorder %s14, 1
          %s169 = scalar_select %p168, %s14, 1
          %s170 = smul.addr %s169, 8
          %s171 = smul.addr %s170, 8
          %s172 = scalar_lea.vmem %s0, %s171
        $region32: #{tpu_custom_call.1} parent=27 // pred_fallthru
          _
      $region28: #{tpu_custom_call.1} parent=5 // pred_fallthru
        _
      %p173 = scmp.le.s32.totalorder 1, %s14
      %p174 = scmp.lt.s32.totalorder %s14, 3
      %p175 = pnand %p173, %p174
      %p176 = pneg %p175
      // Predicated region
      $region33: #{tpu_custom_call.1} parent=5 // pred_check
        _
      $region34: #{tpu_custom_call.1} parent=5 // pred_check_branch
        %178 = sbr.rel (%p175) target = $region36
      $region35: #{tpu_custom_call.1} parent=5 // pred_region
        %s179 = ssub.s32 %s14, 1
        // Predicated region
        $region37: #{tpu_custom_call.1} parent=35 // pred_check
          %p180 = pneg %p103
        $region38: #{tpu_custom_call.1} parent=35 // pred_check_branch
          %182 = sbr.rel (%p180) target = $region40
        $region39: #{tpu_custom_call.1} parent=35 // pred_region
          %183 = dma.done [#allocation5], 16
        $region40: #{tpu_custom_call.1} parent=35 // pred_fallthru
          _
        %184 = sfence
        %p185 = scmp.lt.s32.totalorder %s19, 1
        %s186 = scalar_select %p185, %s19, 1
        %s187 = smul.addr %s186, 8
        %s188 = smul.addr %s187, 8
        %s189 = scalar_lea.vmem %s0, %s188
        %p190 = pneg %p40
        %p191 = pneg %p37
        %p192 = pneg %p61
        %p193 = pneg %p58
        %p194 = pneg %p82
        %p195 = pneg %p79
        %p196 = pneg %p103
        %p197 = pneg %p100
        %p198 = pneg %p129
        %p199 = pneg %p126
        %s200 = sand.u32 %s116, 1
        %s201 = scalar_lea.sflag [#allocation4], %s200
        %s202 = sand.u32 %s116, 1
        %s203 = smul.addr %s202, 64
        %s204 = scalar_lea.vmem [#allocation6], %s203
        %p205 = scmp.lt.s32.totalorder %s19, 1
        %s206 = scalar_select %p205, %s19, 1
        %s207 = smul.addr %s206, 8
        %s208 = smul.addr %s207, 8
        %s209 = scalar_lea.vmem %s0, %s208
        %v210 = vld [vmem:[%s209] sm:$0xff]
        %v211 = vld [vmem:[%s209 + $0x8] sm:$0xff]
        %v212 = vld [vmem:[%s209 + $0x10] sm:$0xff]
        %v213 = vld [vmem:[%s209 + $0x18] sm:$0xff]
        %v214 = vld [vmem:[%s209 + $0x20] sm:$0xff]
        %v215 = vld [vmem:[%s209 + $0x28] sm:$0xff]
        %v216 = vld [vmem:[%s209 + $0x30] sm:$0xff]
        %v217 = vld [vmem:[%s209 + $0x38] sm:$0xff]
        %v218 = vadd.f32 %v210, %v211
        %219 = vadd.xlane.f32.xlu0 %v218
        %v220 = vpop.xlane.xlu0 %219
        %v221 = vadd.f32 %v212, %v213
        %222 = vadd.xlane.f32.xlu0 %v221
        %v223 = vpop.xlane.xlu0 %222
        %v224 = vadd.f32 %v214, %v215
        %225 = vadd.xlane.f32.xlu0 %v224
        %v226 = vpop.xlane.xlu0 %225
        %v227 = vadd.f32 %v216, %v217
        %228 = vadd.xlane.f32.xlu0 %v227
        %v229 = vpop.xlane.xlu0 %228
        %v230 = vrcp.pop 256.0
        %v231 = vmul.f32 %v220, %v230
        %v232 = vmul.f32 %v223, %v230
        %v233 = vmul.f32 %v226, %v230
        %v234 = vmul.f32 %v229, %v230
        %v235 = vmax.f32 %v210, %v211
        %236 = vmax.xlane.f32.xlu0 %v235
        %v237 = vpop.xlane.xlu0 %236
        %v238 = vmax.f32 %v212, %v213
        %239 = vmax.xlane.f32.xlu0 %v238
        %v240 = vpop.xlane.xlu0 %239
        %v241 = vmax.f32 %v214, %v215
        %242 = vmax.xlane.f32.xlu0 %v241
        %v243 = vpop.xlane.xlu0 %242
        %v244 = vmax.f32 %v216, %v217
        %245 = vmax.xlane.f32.xlu0 %v244
        %v246 = vpop.xlane.xlu0 %245
        %v251 = vlaneseq
        %v252 = vand.u32 %v251, 127
        %v253 = vlaneseq
        %v254 = vshrl.u32 %v253, 7
        %v255 = vsub.s32 %v252, %v254
        %v256 = vrot.slane %v231, %v255
        %v257 = vadd.s32 %v252, 4294967288
        %v258 = vlaneseq
        %v259 = vshrl.u32 %v258, 7
        %v260 = vsub.s32 %v257, %v259
        %v261 = vrot.slane %v232, %v260
        %vm262 = vcmask 130112
        %v263 = vsel %vm262, %v261, %v256
        %v264 = vadd.s32 %v252, 4294967280
        %v265 = vlaneseq
        %v266 = vshrl.u32 %v265, 7
        %v267 = vsub.s32 %v264, %v266
        %v268 = vrot.slane %v233, %v267
        %vm269 = vcmask 195712
        %v270 = vsel %vm269, %v268, %v263
        %v271 = vadd.s32 %v252, 4294967272
        %v272 = vlaneseq
        %v273 = vshrl.u32 %v272, 7
        %v274 = vsub.s32 %v271, %v273
        %v275 = vrot.slane %v234, %v274
        %vm276 = vcmask 261312
        %v277 = vsel %vm276, %v275, %v270
        %v283 = vlaneseq
        %v284 = vshrl.u32 %v283, 7
        %v285 = vsub.s32 %v252, %v284
        %v286 = vrot.slane %v237, %v285
        %v287 = vlaneseq
        %v288 = vshrl.u32 %v287, 7
        %v289 = vsub.s32 %v257, %v288
        %v290 = vrot.slane %v240, %v289
        %v291 = vsel %vm262, %v290, %v286
        %v292 = vlaneseq
        %v293 = vshrl.u32 %v292, 7
        %v294 = vsub.s32 %v264, %v293
        %v295 = vrot.slane %v243, %v294
        %v296 = vsel %vm269, %v295, %v291
        %v297 = vlaneseq
        %v298 = vshrl.u32 %v297, 7
        %v299 = vsub.s32 %v271, %v298
        %v300 = vrot.slane %v246, %v299
        %v301 = vsel %vm276, %v300, %v296
        %vm303 = vcmask 1040384
        %v304 = vsel %vm303, %v277, %v301
        %v305 = vld [vmem:[%s1] sm:$0xff]
        %v306 = vld [vmem:[%s1 + $0x8] sm:$0xff]
        %v307 = vld [vmem:[%s1 + $0x10] sm:$0xff]
        %v308 = vld [vmem:[%s1 + $0x18] sm:$0xff]
        %v309 = vld [vmem:[%s2] sm:$0xff]
        %v310 = vld [vmem:[%s2 + $0x8] sm:$0xff]
        %v311 = vld [vmem:[%s2 + $0x10] sm:$0xff]
        %v312 = vld [vmem:[%s2 + $0x18] sm:$0xff]
        %v313 = vld [vmem:[%s2 + $0x20] sm:$0xff]
        %v314 = vld [vmem:[%s2 + $0x28] sm:$0xff]
        %v315 = vld [vmem:[%s2 + $0x30] sm:$0xff]
        %v316 = vld [vmem:[%s2 + $0x38] sm:$0xff]
        %v317 = vld [vmem:[%s2 + $0x40] sm:$0xff]
        %v318 = vld [vmem:[%s2 + $0x48] sm:$0xff]
        %v319 = vld [vmem:[%s2 + $0x50] sm:$0xff]
        %v320 = vld [vmem:[%s2 + $0x58] sm:$0xff]
        %v321 = vld [vmem:[%s2 + $0x60] sm:$0xff]
        %v322 = vld [vmem:[%s2 + $0x68] sm:$0xff]
        %v323 = vld [vmem:[%s2 + $0x70] sm:$0xff]
        %v324 = vld [vmem:[%s2 + $0x78] sm:$0xff]
        %vm325 = vcmask 261120
        %v327 = vsel %vm325, %v304, 0
        %329 = vmatprep.subr.mxu0 0.0
        %330 = vmatpush1.msra.mxu0 %v305
        %331 = vmatprep.subr.mxu0 0.0
        %332 = vmatpush1.msra.mxu0 %v306
        %333 = vmatprep.subr.mxu0 0.0
        %334 = vmatpush1.msra.mxu0 %v307
        %335 = vmatprep.subr.mxu0 0.0
        %336 = vmatpush1.msra.mxu0 %v308
        %337 = vmatprep.subr.mxu0 0.0
        %338 = vmatpush1.msra.mxu0 0.0
        %339 = vmatprep.subr.mxu0 0.0
        %340 = vmatpush1.msra.mxu0 0.0
        %341 = vmatprep.subr.mxu0 0.0
        %342 = vmatpush1.msra.mxu0 0.0
        %343 = vmatprep.subr.mxu0 0.0
        %344 = vmatpush1.msra.mxu0 0.0
        %345 = vmatprep.subr.mxu0 0.0
        %346 = vmatpush1.msra.mxu0 0.0
        %347 = vmatprep.subr.mxu0 0.0
        %348 = vmatpush1.msra.mxu0 0.0
        %349 = vmatprep.subr.mxu0 0.0
        %350 = vmatpush1.msra.mxu0 0.0
        %351 = vmatprep.subr.mxu0 0.0
        %352 = vmatpush1.msra.mxu0 0.0
        %353 = vmatprep.subr.mxu0 0.0
        %354 = vmatpush1.msra.mxu0 0.0
        %355 = vmatprep.subr.mxu0 0.0
        %356 = vmatpush1.msra.mxu0 0.0
        %357 = vmatprep.subr.mxu0 0.0
        %358 = vmatpush1.msra.mxu0 0.0
        %359 = vmatprep.subr.mxu0 0.0
        %360 = vmatpush1.msra.mxu0 0.0
        %361 = vmatprep.subr.mxu0 0.0
        %362 = vmatpush1.msra.mxu0 0.0
        %363 = vmatprep.subr.mxu0 0.0
        %364 = vmatpush1.msra.mxu0 0.0
        %365 = vmatprep.subr.mxu0 0.0
        %366 = vmatpush1.msra.mxu0 0.0
        %367 = vmatprep.subr.mxu0 0.0
        %368 = vmatpush1.msra.mxu0 0.0
        %369 = vmatprep.subr.mxu0 0.0
        %370 = vmatpush1.msra.mxu0 0.0
        %371 = vmatprep.subr.mxu0 0.0
        %372 = vmatpush1.msra.mxu0 0.0
        %373 = vmatprep.subr.mxu0 0.0
        %374 = vmatpush1.msra.mxu0 0.0
        %375 = vmatprep.subr.mxu0 0.0
        %376 = vmatpush1.msra.mxu0 0.0
        %377 = vmatprep.subr.mxu0 0.0
        %378 = vmatpush1.msra.mxu0 0.0
        %379 = vmatprep.subr.mxu0 0.0
        %380 = vmatpush1.msra.mxu0 0.0
        %381 = vmatprep.subr.mxu0 0.0
        %382 = vmatpush1.msra.mxu0 0.0
        %383 = vmatprep.subr.mxu0 0.0
        %384 = vmatpush1.msra.mxu0 0.0
        %385 = vmatprep.subr.mxu0 0.0
        %386 = vmatpush1.msra.mxu0 0.0
        %387 = vmatprep.subr.mxu0 0.0
        %388 = vmatpush1.msra.mxu0 0.0
        %389 = vmatprep.subr.mxu0 0.0
        %390 = vmatpush1.msra.mxu0 0.0
        %391 = vmatprep.subr.mxu0 0.0
        %392 = vmatpush1.msra.mxu0 0.0
        %393 = vmatprep.mubr.f32.mxu0 0.0
        %394 = vmatmul.mubr.f32.gmra.mrb[0].mxu0 %v327
        %v395 = vpop.f32.mrb[0].mxu0
        %v396 = vadd.f32 0.0, %v395
        %v397 = vpop.f32.mrb[0].mxu0
        %398 = vdwg.mxu0
        %v399 = vmax.f32 %v396, 0.0
        %400 = vmatprep.subr.mxu0 0.0
        %401 = vmatpush1.msra.mxu0 %v309
        %402 = vmatprep.subr.mxu0 0.0
        %403 = vmatpush1.msra.mxu0 %v310
        %404 = vmatprep.subr.mxu0 0.0
        %405 = vmatpush1.msra.mxu0 %v311
        %406 = vmatprep.subr.mxu0 0.0
        %407 = vmatpush1.msra.mxu0 %v312
        %408 = vmatprep.subr.mxu0 0.0
        %409 = vmatpush1.msra.mxu0 %v313
        %410 = vmatprep.subr.mxu0 0.0
        %411 = vmatpush1.msra.mxu0 %v314
        %412 = vmatprep.subr.mxu0 0.0
        %413 = vmatpush1.msra.mxu0 %v315
        %414 = vmatprep.subr.mxu0 0.0
        %415 = vmatpush1.msra.mxu0 %v316
        %416 = vmatprep.subr.mxu0 0.0
        %417 = vmatpush1.msra.mxu0 %v317
        %418 = vmatprep.subr.mxu0 0.0
        %419 = vmatpush1.msra.mxu0 %v318
        %420 = vmatprep.subr.mxu0 0.0
        %421 = vmatpush1.msra.mxu0 %v319
        %422 = vmatprep.subr.mxu0 0.0
        %423 = vmatpush1.msra.mxu0 %v320
        %424 = vmatprep.subr.mxu0 0.0
        %425 = vmatpush1.msra.mxu0 %v321
        %426 = vmatprep.subr.mxu0 0.0
        %427 = vmatpush1.msra.mxu0 %v322
        %428 = vmatprep.subr.mxu0 0.0
        %429 = vmatpush1.msra.mxu0 %v323
        %430 = vmatprep.subr.mxu0 0.0
        %431 = vmatpush1.msra.mxu0 %v324
        %432 = vmatprep.subr.mxu0 0.0
        %433 = vmatpush1.msra.mxu0 0.0
        %434 = vmatprep.subr.mxu0 0.0
        %435 = vmatpush1.msra.mxu0 0.0
        %436 = vmatprep.subr.mxu0 0.0
        %437 = vmatpush1.msra.mxu0 0.0
        %438 = vmatprep.subr.mxu0 0.0
        %439 = vmatpush1.msra.mxu0 0.0
        %440 = vmatprep.subr.mxu0 0.0
        %441 = vmatpush1.msra.mxu0 0.0
        %442 = vmatprep.subr.mxu0 0.0
        %443 = vmatpush1.msra.mxu0 0.0
        %444 = vmatprep.subr.mxu0 0.0
        %445 = vmatpush1.msra.mxu0 0.0
        %446 = vmatprep.subr.mxu0 0.0
        %447 = vmatpush1.msra.mxu0 0.0
        %448 = vmatprep.subr.mxu0 0.0
        %449 = vmatpush1.msra.mxu0 0.0
        %450 = vmatprep.subr.mxu0 0.0
        %451 = vmatpush1.msra.mxu0 0.0
        %452 = vmatprep.subr.mxu0 0.0
        %453 = vmatpush1.msra.mxu0 0.0
        %454 = vmatprep.subr.mxu0 0.0
        %455 = vmatpush1.msra.mxu0 0.0
        %456 = vmatprep.subr.mxu0 0.0
        %457 = vmatpush1.msra.mxu0 0.0
        %458 = vmatprep.subr.mxu0 0.0
        %459 = vmatpush1.msra.mxu0 0.0
        %460 = vmatprep.subr.mxu0 0.0
        %461 = vmatpush1.msra.mxu0 0.0
        %462 = vmatprep.subr.mxu0 0.0
        %463 = vmatpush1.msra.mxu0 0.0
        %464 = vmatprep.mubr.f32.mxu0 0.0
        %465 = vmatmul.mubr.f32.gmra.mrb[0].mxu0 %v399
        %v466 = vpop.f32.mrb[0].mxu0
        %v467 = vadd.f32 0.0, %v466
        %v468 = vpop.f32.mrb[0].mxu0
        %469 = vdwg.mxu0
        %v471 = vrot.slane %v467, 1
        %v473 = vadd.f32 %v467, %v471
        %v474 = vxor.u32 %v473, 2147483648
        %v475 = vmul.f32 %v474, 1.442695
        %v476 = vpow.pop %v475
        %v477 = vadd.f32 %v476, 1.0
        %v478 = vrcp.pop %v477
        %v479 = vmul.f32 1.0, %v478
        %v480 = vlaneseq
        %v481 = vshrl.u32 %v480, 7
        %v482 = vsub.s32 0, %v481
        %v483 = vrot.slane %v479, %v482
        %485 = vbcast.lane.b32.xlu0 %v483, 256
        %v486 = vpop.permute.xlu0 %485
        %s488 = sor.u32 256, 8
        %489 = vbcast.lane.b32.xlu0 %v483, %s488
        %v490 = vpop.permute.xlu0 %489
        %s492 = sor.u32 256, 16
        %493 = vbcast.lane.b32.xlu0 %v483, %s492
        %v494 = vpop.permute.xlu0 %493
        %s496 = sor.u32 256, 24
        %497 = vbcast.lane.b32.xlu0 %v483, %s496
        %v498 = vpop.permute.xlu0 %497
        %v499 = vmul.f32 %v210, %v486
        %v500 = vmul.f32 %v211, %v486
        %v501 = vmul.f32 %v212, %v490
        %v502 = vmul.f32 %v213, %v490
        %v503 = vmul.f32 %v214, %v494
        %v504 = vmul.f32 %v215, %v494
        %v505 = vmul.f32 %v216, %v498
        %v506 = vmul.f32 %v217, %v498
        %v507 = vadd.f32 %v499, %v501
        %v508 = vadd.f32 %v507, %v503
        %v509 = vadd.f32 %v508, %v505
        %v510 = vrot.slane %v509, 4
        %v511 = vadd.f32 %v509, %v510
        %v512 = vrot.slane %v511, 2
        %v513 = vadd.f32 %v511, %v512
        %v514 = vrot.slane %v513, 1
        %v515 = vadd.f32 %v513, %v514
        %v516 = vadd.f32 %v500, %v502
        %v517 = vadd.f32 %v516, %v504
        %v518 = vadd.f32 %v517, %v506
        %v519 = vrot.slane %v518, 4
        %v520 = vadd.f32 %v518, %v519
        %v521 = vrot.slane %v520, 2
        %v522 = vadd.f32 %v520, %v521
        %v523 = vrot.slane %v522, 1
        %v524 = vadd.f32 %v522, %v523
        %v525 = vrcp.pop 32.0
        %v526 = vmul.f32 %v515, %v525
        %v527 = vmul.f32 %v524, %v525
        %v528 = vmax.f32 %v499, %v503
        %v529 = vmax.f32 %v501, %v505
        %v530 = vmax.f32 %v528, %v529
        %v531 = vrot.slane %v530, 4
        %v532 = vmax.f32 %v530, %v531
        %v533 = vrot.slane %v532, 2
        %v534 = vmax.f32 %v532, %v533
        %v535 = vrot.slane %v534, 1
        %v536 = vmax.f32 %v534, %v535
        %v537 = vmax.f32 %v500, %v504
        %v538 = vmax.f32 %v502, %v506
        %v539 = vmax.f32 %v537, %v538
        %v540 = vrot.slane %v539, 4
        %v541 = vmax.f32 %v539, %v540
        %v542 = vrot.slane %v541, 2
        %v543 = vmax.f32 %v541, %v542
        %v544 = vrot.slane %v543, 1
        %v545 = vmax.f32 %v543, %v544
        %546 = vst [vmem:[#allocation2] sm:$0x3] 0.0
        %547 = vst [vmem:[#allocation2 + $0x6] sm:$0x3] 0.0
        %v550 = vcombine.low %v526, %v527
        %v552 = vunpack.c.l.s4 1966171168
        %v553 = vunpack.c.0.s8 %v552
        %v554 = vlaneseq
        %v555 = vshrl.u32 %v554, 7
        %v556 = vsub.s32 %v553, %v555
        %v557 = vrot.slane %v550, %v556
        %v559 = vunpack.c.l.s4 1966171168
        %v560 = vunpack.c.0.s8 %v559
        %v561 = vlaneseq
        %v562 = vshrl.u32 %v561, 7
        %v563 = vsub.s32 %v560, %v562
        %v564 = vrot.slane %v557, %v563
        %v566 = vlaneseq
        %vm567 = vcmp.ge.s32.totalorder %v566, 0
        %vm568 = vcmp.lt.s32.totalorder %v566, 256
        %vm569 = vmand %vm567, %vm568
        %s570 = scalar_lea.vmem [#allocation2], 2
        %571 = vst.msk [vmem:[%s570] ss:$2 sm:$0x3] %vm569, %v564
        %v574 = vcombine.low %v536, %v545
        %v576 = vunpack.c.l.s4 1966171168
        %v577 = vunpack.c.0.s8 %v576
        %v578 = vlaneseq
        %v579 = vshrl.u32 %v578, 7
        %v580 = vsub.s32 %v577, %v579
        %v581 = vrot.slane %v574, %v580
        %v583 = vunpack.c.l.s4 1966171168
        %v584 = vunpack.c.0.s8 %v583
        %v585 = vlaneseq
        %v586 = vshrl.u32 %v585, 7
        %v587 = vsub.s32 %v584, %v586
        %v588 = vrot.slane %v581, %v587
        %s590 = scalar_lea.vmem [#allocation2], 3
        %591 = vst.msk [vmem:[%s590] ss:$2 sm:$0x3] %vm569, %v588
        %v592 = vadd.s32 %v252, 128
        %vm593 = vcmp.lt.s32.totalorder %v252, 0
        %v594 = vsub.s32 0, %v252
        %v595 = vsel %vm593, %v594, %v252
        %v596 = vshrl.u32 %v595, 4
        %v597 = vand.u32 %v595, 15
        %v598 = vsub.s32 0, %v597
        %v599 = vsel %vm593, %v598, %v597
        %vm600 = vcmp.lt.s32.totalorder %v592, 0
        %v601 = vsub.s32 0, %v592
        %v602 = vsel %vm600, %v601, %v592
        %v603 = vshrl.u32 %v602, 4
        %v604 = vand.u32 %v602, 15
        %v605 = vsub.s32 0, %v604
        %v606 = vsel %vm600, %v605, %v604
        %vm607 = vcmp.ne.s32.totalorder %v599, 0
        %vm608 = vcmp.ne.s32.totalorder %v606, 0
        %vm609 = vcmp.lt.s32.totalorder %v599, 0
        %vm610 = vcmp.lt.s32.totalorder %v606, 0
        %vm611 = vmand %vm609, %vm607
        %vm612 = vmand %vm610, %vm608
        %v613 = vadd.s32 %v599, 16
        %v614 = vadd.s32 %v606, 16
        %v615 = vsel %vm611, %v613, %v599
        %v616 = vsel %vm612, %v614, %v606
        %s617 = sld [smem:[#allocation3]]
        %s618 = sld [smem:[#allocation3 + $0x1]]
        %s619 = sld [smem:[#allocation3 + $0x2]]
        %s620 = sld [smem:[#allocation3 + $0x3]]
        %s621 = sld [smem:[#allocation3 + $0x4]]
        %s622 = sld [smem:[#allocation3 + $0x5]]
        %s623 = sld [smem:[#allocation3 + $0x6]]
        %s624 = sld [smem:[#allocation3 + $0x7]]
        %s625 = sld [smem:[#allocation3 + $0x8]]
        %s626 = sld [smem:[#allocation3 + $0x9]]
        %s627 = sld [smem:[#allocation3 + $0xa]]
        %s628 = sld [smem:[#allocation3 + $0xb]]
        %s629 = sld [smem:[#allocation3 + $0xc]]
        %s630 = sld [smem:[#allocation3 + $0xd]]
        %s631 = sld [smem:[#allocation3 + $0xe]]
        %s632 = sld [smem:[#allocation3 + $0xf]]
        %s633 = sld [smem:[#allocation3 + $0x10]]
        %s634 = sld [smem:[#allocation3 + $0x11]]
        %s635 = sld [smem:[#allocation3 + $0x12]]
        %s636 = sld [smem:[#allocation3 + $0x13]]
        %s637 = sld [smem:[#allocation3 + $0x14]]
        %s638 = sld [smem:[#allocation3 + $0x15]]
        %s639 = sld [smem:[#allocation3 + $0x16]]
        %s640 = sld [smem:[#allocation3 + $0x17]]
        %s641 = sld [smem:[#allocation3 + $0x18]]
        %s642 = sld [smem:[#allocation3 + $0x19]]
        %s643 = sld [smem:[#allocation3 + $0x1a]]
        %s644 = sld [smem:[#allocation3 + $0x1b]]
        %s645 = sld [smem:[#allocation3 + $0x1c]]
        %s646 = sld [smem:[#allocation3 + $0x1d]]
        %s647 = sld [smem:[#allocation3 + $0x1e]]
        %s648 = sld [smem:[#allocation3 + $0x1f]]
        %s649 = sld [smem:[#allocation3 + $0x20]]
        %s650 = sld [smem:[#allocation3 + $0x21]]
        %s651 = sld [smem:[#allocation3 + $0x22]]
        %s652 = sld [smem:[#allocation3 + $0x23]]
        %s653 = sld [smem:[#allocation3 + $0x24]]
        %s654 = sld [smem:[#allocation3 + $0x25]]
        %s655 = sld [smem:[#allocation3 + $0x26]]
        %s656 = sld [smem:[#allocation3 + $0x27]]
        %s657 = sld [smem:[#allocation3 + $0x28]]
        %s658 = sld [smem:[#allocation3 + $0x29]]
        %s659 = sld [smem:[#allocation3 + $0x2a]]
        %s660 = sld [smem:[#allocation3 + $0x2b]]
        %s661 = sld [smem:[#allocation3 + $0x2c]]
        %s662 = sld [smem:[#allocation3 + $0x2d]]
        %s663 = sld [smem:[#allocation3 + $0x2e]]
        %s664 = sld [smem:[#allocation3 + $0x2f]]
        %s665 = sld [smem:[#allocation3 + $0x30]]
        %s666 = sld [smem:[#allocation3 + $0x31]]
        %s667 = sld [smem:[#allocation3 + $0x32]]
        %s668 = sld [smem:[#allocation3 + $0x33]]
        %s669 = sld [smem:[#allocation3 + $0x34]]
        %s670 = sld [smem:[#allocation3 + $0x35]]
        %s671 = sld [smem:[#allocation3 + $0x36]]
        %s672 = sld [smem:[#allocation3 + $0x37]]
        %s673 = sld [smem:[#allocation3 + $0x38]]
        %s674 = sld [smem:[#allocation3 + $0x39]]
        %s675 = sld [smem:[#allocation3 + $0x3a]]
        %s676 = sld [smem:[#allocation3 + $0x3b]]
        %s677 = sld [smem:[#allocation3 + $0x3c]]
        %s678 = sld [smem:[#allocation3 + $0x3d]]
        %s679 = sld [smem:[#allocation3 + $0x3e]]
        %s680 = sld [smem:[#allocation3 + $0x3f]]
        %s681 = sld [smem:[#allocation3 + $0x40]]
        %s682 = sld [smem:[#allocation3 + $0x41]]
        %s683 = sld [smem:[#allocation3 + $0x42]]
        %s684 = sld [smem:[#allocation3 + $0x43]]
        %s685 = sld [smem:[#allocation3 + $0x44]]
        %s686 = sld [smem:[#allocation3 + $0x45]]
        %s687 = sld [smem:[#allocation3 + $0x46]]
        %s688 = sld [smem:[#allocation3 + $0x47]]
        %s689 = sld [smem:[#allocation3 + $0x48]]
        %s690 = sld [smem:[#allocation3 + $0x49]]
        %s691 = sld [smem:[#allocation3 + $0x4a]]
        %s692 = sld [smem:[#allocation3 + $0x4b]]
        %s693 = sld [smem:[#allocation3 + $0x4c]]
        %s694 = sld [smem:[#allocation3 + $0x4d]]
        %s695 = sld [smem:[#allocation3 + $0x4e]]
        %s696 = sld [smem:[#allocation3 + $0x4f]]
        %s697 = sld [smem:[#allocation3 + $0x50]]
        %s698 = sld [smem:[#allocation3 + $0x51]]
        %s699 = sld [smem:[#allocation3 + $0x52]]
        %s700 = sld [smem:[#allocation3 + $0x53]]
        %s701 = sld [smem:[#allocation3 + $0x54]]
        %s702 = sld [smem:[#allocation3 + $0x55]]
        %s703 = sld [smem:[#allocation3 + $0x56]]
        %s704 = sld [smem:[#allocation3 + $0x57]]
        %s705 = sld [smem:[#allocation3 + $0x58]]
        %s706 = sld [smem:[#allocation3 + $0x59]]
        %s707 = sld [smem:[#allocation3 + $0x5a]]
        %s708 = sld [smem:[#allocation3 + $0x5b]]
        %s709 = sld [smem:[#allocation3 + $0x5c]]
        %s710 = sld [smem:[#allocation3 + $0x5d]]
        %s711 = sld [smem:[#allocation3 + $0x5e]]
        %s712 = sld [smem:[#allocation3 + $0x5f]]
        %s713 = sld [smem:[#allocation3 + $0x60]]
        %s714 = sld [smem:[#allocation3 + $0x61]]
        %v715 = vadd.s32 %v615, 4294967293
        %v716 = vadd.s32 %v616, 4294967293
        %vm717 = vcmp.ge.s32.totalorder %v715, 0
        %vm718 = vcmp.ge.s32.totalorder %v716, 0
        %vm719 = vcmp.lt.s32.totalorder %v715, 16
        %vm720 = vcmp.lt.s32.totalorder %v716, 16
        %vm721 = vmand %vm717, %vm719
        %vm722 = vmand %vm718, %vm720
        %v723 = vsel %vm721, 1, 0
        %v724 = vsel %vm722, 1, 0
        %v725 = vcvt.s32.f32 %v723
        %v726 = vcvt.s32.f32 %v724
        %v727 = vld [vmem:[#allocation2] sm:$0x3f]
        %v728 = vstv %s617
        %v729 = vmul.f32 %v727, %v728
        %v730 = vstv %s666
        %v731 = vmul.f32 %v727, %v730
        %v733 = vrot.slane %v731, 7
        %v734 = vrot.slane %v733, 2
        %v736 = vadd.f32 %v729, %v734
        %v739 = vcombine.low %v725, %v726
        %v741 = vunpack.c.l.s4 1983009808
        %v742 = vunpack.c.0.s8 %v741
        %v743 = vlaneseq
        %v744 = vshrl.u32 %v743, 7
        %v745 = vsub.s32 %v742, %v744
        %v746 = vrot.slane %v739, %v745
        %747 = vrot.lane.b32.xlu0 %v746, 77
        %v748 = vpop.permute.xlu0 %747
        %v749 = vrot.slane %v748, 6
        %vm750 = vcmask 629760
        %v751 = vsel %vm750, %v749, %v748
        %v753 = vmul.f32 %v736, %v751
        %v754 = vadd.f32 %v753, 0.0
        %v755 = vstv %s624
        %v756 = vmul.f32 %v727, %v755
        %v757 = vstv %s673
        %v758 = vmul.f32 %v727, %v757
        %v760 = vrot.slane %v758, 7
        %v761 = vrot.slane %v760, 2
        %v763 = vadd.f32 %v756, %v761
        %764 = vrot.lane.b32.xlu0 %v746, 93
        %v765 = vpop.permute.xlu0 %764
        %v766 = vrot.slane %v765, 6
        %vm767 = vcmask 760832
        %v768 = vsel %vm767, %v766, %v765
        %v770 = vmul.f32 %v763, %v768
        %v771 = vadd.f32 %v770, 0.0
        %v772 = vstv %s631
        %v773 = vmul.f32 %v727, %v772
        %v774 = vstv %s680
        %v775 = vmul.f32 %v727, %v774
        %v777 = vrot.slane %v775, 7
        %v778 = vrot.slane %v777, 2
        %v780 = vadd.f32 %v773, %v778
        %781 = vrot.lane.b32.xlu0 %v746, 109
        %v782 = vpop.permute.xlu0 %781
        %v783 = vrot.slane %v782, 6
        %vm784 = vcmask 891904
        %v785 = vsel %vm784, %v783, %v782
        %v787 = vmul.f32 %v780, %v785
        %v788 = vadd.f32 %v787, 0.0
        %v789 = vstv %s638
        %v790 = vmul.f32 %v727, %v789
        %v791 = vstv %s687
        %v792 = vmul.f32 %v727, %v791
        %v794 = vrot.slane %v792, 7
        %v795 = vrot.slane %v794, 2
        %v797 = vadd.f32 %v790, %v795
        %798 = vrot.lane.b32.xlu0 %v746, 125
        %v799 = vpop.permute.xlu0 %798
        %v800 = vrot.slane %v799, 6
        %vm801 = vcmask 1022976
        %v802 = vsel %vm801, %v800, %v799
        %v804 = vmul.f32 %v797, %v802
        %v805 = vadd.f32 %v804, 0.0
        %v806 = vld [vmem:[#allocation2 + $0x2] sm:$0x3f]
        %v807 = vstv %s645
        %v808 = vmul.f32 %v806, %v807
        %v809 = vstv %s694
        %v810 = vmul.f32 %v806, %v809
        %v812 = vrot.slane %v810, 7
        %v813 = vrot.slane %v812, 2
        %v815 = vadd.f32 %v808, %v813
        %816 = vrot.lane.b32.xlu0 %v746, 13
        %v817 = vpop.permute.xlu0 %816
        %v818 = vrot.slane %v817, 6
        %vm819 = vcmask 105472
        %v820 = vsel %vm819, %v818, %v817
        %v822 = vmul.f32 %v815, %v820
        %824 = vrot.lane.b32.xlu0 %v822, 64
        %v825 = vpop.permute.xlu0 %824
        %v826 = vrot.slane %v825, 6
        %vm827 = vcmask 523264
        %v828 = vsel %vm827, %v826, %v825
        %v830 = vadd.f32 %v754, %v828
        %v831 = vstv %s652
        %v832 = vmul.f32 %v806, %v831
        %v833 = vstv %s701
        %v834 = vmul.f32 %v806, %v833
        %v836 = vrot.slane %v834, 7
        %v837 = vrot.slane %v836, 2
        %v839 = vadd.f32 %v832, %v837
        %840 = vrot.lane.b32.xlu0 %v746, 29
        %v841 = vpop.permute.xlu0 %840
        %v842 = vrot.slane %v841, 6
        %vm843 = vcmask 236544
        %v844 = vsel %vm843, %v842, %v841
        %v846 = vmul.f32 %v839, %v844
        %848 = vrot.lane.b32.xlu0 %v846, 64
        %v849 = vpop.permute.xlu0 %848
        %v850 = vrot.slane %v849, 6
        %v851 = vsel %vm827, %v850, %v849
        %v853 = vadd.f32 %v771, %v851
        %v854 = vstv %s659
        %v855 = vmul.f32 %v806, %v854
        %v856 = vstv %s708
        %v857 = vmul.f32 %v806, %v856
        %v859 = vrot.slane %v857, 7
        %v860 = vrot.slane %v859, 2
        %v862 = vadd.f32 %v855, %v860
        %863 = vrot.lane.b32.xlu0 %v746, 45
        %v864 = vpop.permute.xlu0 %863
        %v865 = vrot.slane %v864, 6
        %vm866 = vcmask 367616
        %v867 = vsel %vm866, %v865, %v864
        %v869 = vmul.f32 %v862, %v867
        %871 = vrot.lane.b32.xlu0 %v869, 64
        %v872 = vpop.permute.xlu0 %871
        %v873 = vrot.slane %v872, 6
        %v874 = vsel %vm827, %v873, %v872
        %v876 = vadd.f32 %v788, %v874
        %v877 = vadd.s32 %v615, 4294967294
        %v878 = vadd.s32 %v616, 4294967294
        %vm879 = vcmp.ge.s32.totalorder %v877, 0
        %vm880 = vcmp.ge.s32.totalorder %v878, 0
        %vm881 = vcmp.lt.s32.totalorder %v877, 16
        %vm882 = vcmp.lt.s32.totalorder %v878, 16
        %vm883 = vmand %vm879, %vm881
        %vm884 = vmand %vm880, %vm882
        %v885 = vsel %vm883, 1, 0
        %v886 = vsel %vm884, 1, 0
        %v887 = vcvt.s32.f32 %v885
        %v888 = vcvt.s32.f32 %v886
        %v889 = vstv %s618
        %v890 = vmul.f32 %v727, %v889
        %v891 = vstv %s667
        %v892 = vmul.f32 %v727, %v891
        %v894 = vrot.slane %v892, 7
        %v895 = vrot.slane %v894, 2
        %v897 = vadd.f32 %v890, %v895
        %v900 = vcombine.low %v887, %v888
        %v902 = vunpack.c.l.s4 1983009808
        %v903 = vunpack.c.0.s8 %v902
        %v904 = vlaneseq
        %v905 = vshrl.u32 %v904, 7
        %v906 = vsub.s32 %v903, %v905
        %v907 = vrot.slane %v900, %v906
        %908 = vrot.lane.b32.xlu0 %v907, 78
        %v909 = vpop.permute.xlu0 %908
        %v910 = vrot.slane %v909, 6
        %vm911 = vcmask 637952
        %v912 = vsel %vm911, %v910, %v909
        %v914 = vmul.f32 %v897, %v912
        %916 = vrot.lane.b32.xlu0 %v914, 47
        %v917 = vpop.permute.xlu0 %916
        %v918 = vrot.slane %v917, 6
        %vm919 = vcmask 384000
        %v920 = vsel %vm919, %v918, %v917
        %v922 = vadd.f32 %v805, %v920
        %v923 = vstv %s625
        %v924 = vmul.f32 %v727, %v923
        %v925 = vstv %s674
        %v926 = vmul.f32 %v727, %v925
        %v928 = vrot.slane %v926, 7
        %v929 = vrot.slane %v928, 2
        %v931 = vadd.f32 %v924, %v929
        %932 = vrot.lane.b32.xlu0 %v907, 94
        %v933 = vpop.permute.xlu0 %932
        %v934 = vrot.slane %v933, 6
        %vm935 = vcmask 769024
        %v936 = vsel %vm935, %v934, %v933
        %v938 = vmul.f32 %v931, %v936
        %940 = vrot.lane.b32.xlu0 %v938, 111
        %v941 = vpop.permute.xlu0 %940
        %v942 = vrot.slane %v941, 2
        %vm943 = vcmask 908288
        %v944 = vsel %vm943, %v941, %v942
        %v946 = vadd.f32 %v830, %v944
        %v947 = vstv %s632
        %v948 = vmul.f32 %v727, %v947
        %v949 = vstv %s681
        %v950 = vmul.f32 %v727, %v949
        %v952 = vrot.slane %v950, 7
        %v953 = vrot.slane %v952, 2
        %v955 = vadd.f32 %v948, %v953
        %956 = vrot.lane.b32.xlu0 %v907, 110
        %v957 = vpop.permute.xlu0 %956
        %v958 = vrot.slane %v957, 6
        %vm959 = vcmask 900096
        %v960 = vsel %vm959, %v958, %v957
        %v962 = vmul.f32 %v955, %v960
        %964 = vrot.lane.b32.xlu0 %v962, 111
        %v965 = vpop.permute.xlu0 %964
        %v966 = vrot.slane %v965, 2
        %v967 = vsel %vm943, %v965, %v966
        %v969 = vadd.f32 %v853, %v967
        %v970 = vstv %s639
        %v971 = vmul.f32 %v727, %v970
        %v972 = vstv %s688
        %v973 = vmul.f32 %v727, %v972
        %v975 = vrot.slane %v973, 7
        %v976 = vrot.slane %v975, 2
        %v978 = vadd.f32 %v971, %v976
        %979 = vrot.lane.b32.xlu0 %v907, 126
        %v980 = vpop.permute.xlu0 %979
        %v981 = vrot.slane %v980, 6
        %vm982 = vcmask 1031168
        %v983 = vsel %vm982, %v981, %v980
        %v985 = vmul.f32 %v978, %v983
        %987 = vrot.lane.b32.xlu0 %v985, 111
        %v988 = vpop.permute.xlu0 %987
        %v989 = vrot.slane %v988, 2
        %v990 = vsel %vm943, %v988, %v989
        %v992 = vadd.f32 %v876, %v990
        %v993 = vstv %s646
        %v994 = vmul.f32 %v806, %v993
        %v995 = vstv %s695
        %v996 = vmul.f32 %v806, %v995
        %v998 = vrot.slane %v996, 7
        %v999 = vrot.slane %v998, 2
        %v1001 = vadd.f32 %v994, %v999
        %1002 = vrot.lane.b32.xlu0 %v907, 14
        %v1003 = vpop.permute.xlu0 %1002
        %v1004 = vrot.slane %v1003, 6
        %vm1005 = vcmask 113664
        %v1006 = vsel %vm1005, %v1004, %v1003
        %v1008 = vmul.f32 %v1001, %v1006
        %1010 = vrot.lane.b32.xlu0 %v1008, 111
        %v1011 = vpop.permute.xlu0 %1010
        %v1012 = vrot.slane %v1011, 6
        %v1013 = vsel %vm943, %v1012, %v1011
        %v1015 = vadd.f32 %v922, %v1013
        %v1016 = vstv %s653
        %v1017 = vmul.f32 %v806, %v1016
        %v1018 = vstv %s702
        %v1019 = vmul.f32 %v806, %v1018
        %v1021 = vrot.slane %v1019, 7
        %v1022 = vrot.slane %v1021, 2
        %v1024 = vadd.f32 %v1017, %v1022
        %1025 = vrot.lane.b32.xlu0 %v907, 30
        %v1026 = vpop.permute.xlu0 %1025
        %v1027 = vrot.slane %v1026, 6
        %vm1028 = vcmask 244736
        %v1029 = vsel %vm1028, %v1027, %v1026
        %v1031 = vmul.f32 %v1024, %v1029
        %1033 = vrot.lane.b32.xlu0 %v1031, 47
        %v1034 = vpop.permute.xlu0 %1033
        %v1035 = vrot.slane %v1034, 6
        %v1036 = vsel %vm919, %v1035, %v1034
        %v1038 = vadd.f32 %v946, %v1036
        %v1039 = vstv %s660
        %v1040 = vmul.f32 %v806, %v1039
        %v1041 = vstv %s709
        %v1042 = vmul.f32 %v806, %v1041
        %v1044 = vrot.slane %v1042, 7
        %v1045 = vrot.slane %v1044, 2
        %v1047 = vadd.f32 %v1040, %v1045
        %1048 = vrot.lane.b32.xlu0 %v907, 46
        %v1049 = vpop.permute.xlu0 %1048
        %v1050 = vrot.slane %v1049, 6
        %vm1051 = vcmask 375808
        %v1052 = vsel %vm1051, %v1050, %v1049
        %v1054 = vmul.f32 %v1047, %v1052
        %1056 = vrot.lane.b32.xlu0 %v1054, 47
        %v1057 = vpop.permute.xlu0 %1056
        %v1058 = vrot.slane %v1057, 6
        %v1059 = vsel %vm919, %v1058, %v1057
        %v1061 = vadd.f32 %v969, %v1059
        %v1062 = vadd.s32 %v615, 4294967295
        %v1063 = vadd.s32 %v616, 4294967295
        %vm1064 = vcmp.ge.s32.totalorder %v1062, 0
        %vm1065 = vcmp.ge.s32.totalorder %v1063, 0
        %vm1066 = vcmp.lt.s32.totalorder %v1062, 16
        %vm1067 = vcmp.lt.s32.totalorder %v1063, 16
        %vm1068 = vmand %vm1064, %vm1066
        %vm1069 = vmand %vm1065, %vm1067
        %v1070 = vsel %vm1068, 1, 0
        %v1071 = vsel %vm1069, 1, 0
        %v1072 = vcvt.s32.f32 %v1070
        %v1073 = vcvt.s32.f32 %v1071
        %v1074 = vstv %s619
        %v1075 = vmul.f32 %v727, %v1074
        %v1076 = vstv %s668
        %v1077 = vmul.f32 %v727, %v1076
        %v1079 = vrot.slane %v1077, 7
        %v1080 = vrot.slane %v1079, 2
        %v1082 = vadd.f32 %v1075, %v1080
        %v1085 = vcombine.low %v1072, %v1073
        %v1087 = vunpack.c.l.s4 1983009808
        %v1088 = vunpack.c.0.s8 %v1087
        %v1089 = vlaneseq
        %v1090 = vshrl.u32 %v1089, 7
        %v1091 = vsub.s32 %v1088, %v1090
        %v1092 = vrot.slane %v1085, %v1091
        %1093 = vrot.lane.b32.xlu0 %v1092, 79
        %v1094 = vpop.permute.xlu0 %1093
        %v1095 = vrot.slane %v1094, 6
        %vm1096 = vcmask 646144
        %v1097 = vsel %vm1096, %v1095, %v1094
        %v1099 = vmul.f32 %v1082, %v1097
        %1101 = vrot.lane.b32.xlu0 %v1099, 30
        %v1102 = vpop.permute.xlu0 %1101
        %v1103 = vrot.slane %v1102, 6
        %v1104 = vsel %vm1028, %v1103, %v1102
        %v1106 = vadd.f32 %v992, %v1104
        %v1107 = vstv %s626
        %v1108 = vmul.f32 %v727, %v1107
        %v1109 = vstv %s675
        %v1110 = vmul.f32 %v727, %v1109
        %v1112 = vrot.slane %v1110, 7
        %v1113 = vrot.slane %v1112, 2
        %v1115 = vadd.f32 %v1108, %v1113
        %1116 = vrot.lane.b32.xlu0 %v1092, 95
        %v1117 = vpop.permute.xlu0 %1116
        %v1118 = vrot.slane %v1117, 6
        %vm1119 = vcmask 777216
        %v1120 = vsel %vm1119, %v1118, %v1117
        %v1122 = vmul.f32 %v1115, %v1120
        %1124 = vrot.lane.b32.xlu0 %v1122, 30
        %v1125 = vpop.permute.xlu0 %1124
        %v1126 = vrot.slane %v1125, 6
        %v1127 = vsel %vm1028, %v1126, %v1125
        %v1129 = vadd.f32 %v1015, %v1127
        %v1130 = vstv %s633
        %v1131 = vmul.f32 %v727, %v1130
        %v1132 = vstv %s682
        %v1133 = vmul.f32 %v727, %v1132
        %v1135 = vrot.slane %v1133, 7
        %v1136 = vrot.slane %v1135, 2
        %v1138 = vadd.f32 %v1131, %v1136
        %1139 = vrot.lane.b32.xlu0 %v1092, 111
        %v1140 = vpop.permute.xlu0 %1139
        %v1141 = vrot.slane %v1140, 6
        %v1142 = vsel %vm943, %v1141, %v1140
        %v1144 = vmul.f32 %v1138, %v1142
        %1146 = vrot.lane.b32.xlu0 %v1144, 94
        %v1147 = vpop.permute.xlu0 %1146
        %v1148 = vrot.slane %v1147, 2
        %v1149 = vsel %vm935, %v1147, %v1148
        %v1151 = vadd.f32 %v1038, %v1149
        %v1152 = vstv %s640
        %v1153 = vmul.f32 %v727, %v1152
        %v1154 = vstv %s689
        %v1155 = vmul.f32 %v727, %v1154
        %v1157 = vrot.slane %v1155, 7
        %v1158 = vrot.slane %v1157, 2
        %v1160 = vadd.f32 %v1153, %v1158
        %1161 = vrot.lane.b32.xlu0 %v1092, 127
        %v1162 = vpop.permute.xlu0 %1161
        %v1163 = vrot.slane %v1162, 6
        %vm1164 = vcmask 1039360
        %v1165 = vsel %vm1164, %v1163, %v1162
        %v1167 = vmul.f32 %v1160, %v1165
        %1169 = vrot.lane.b32.xlu0 %v1167, 94
        %v1170 = vpop.permute.xlu0 %1169
        %v1171 = vrot.slane %v1170, 2
        %v1172 = vsel %vm935, %v1170, %v1171
        %v1174 = vadd.f32 %v1061, %v1172
        %v1175 = vstv %s647
        %v1176 = vmul.f32 %v806, %v1175
        %v1177 = vstv %s696
        %v1178 = vmul.f32 %v806, %v1177
        %v1180 = vrot.slane %v1178, 7
        %v1181 = vrot.slane %v1180, 2
        %v1183 = vadd.f32 %v1176, %v1181
        %1184 = vrot.lane.b32.xlu0 %v1092, 15
        %v1185 = vpop.permute.xlu0 %1184
        %v1186 = vrot.slane %v1185, 6
        %vm1187 = vcmask 121856
        %v1188 = vsel %vm1187, %v1186, %v1185
        %v1190 = vmul.f32 %v1183, %v1188
        %1192 = vrot.lane.b32.xlu0 %v1190, 94
        %v1193 = vpop.permute.xlu0 %1192
        %v1194 = vrot.slane %v1193, 6
        %v1195 = vsel %vm935, %v1194, %v1193
        %v1197 = vadd.f32 %v1106, %v1195
        %v1198 = vstv %s654
        %v1199 = vmul.f32 %v806, %v1198
        %v1200 = vstv %s703
        %v1201 = vmul.f32 %v806, %v1200
        %v1203 = vrot.slane %v1201, 7
        %v1204 = vrot.slane %v1203, 2
        %v1206 = vadd.f32 %v1199, %v1204
        %1207 = vrot.lane.b32.xlu0 %v1092, 31
        %v1208 = vpop.permute.xlu0 %1207
        %v1209 = vrot.slane %v1208, 6
        %vm1210 = vcmask 252928
        %v1211 = vsel %vm1210, %v1209, %v1208
        %v1213 = vmul.f32 %v1206, %v1211
        %1215 = vrot.lane.b32.xlu0 %v1213, 94
        %v1216 = vpop.permute.xlu0 %1215
        %v1217 = vrot.slane %v1216, 6
        %v1218 = vsel %vm935, %v1217, %v1216
        %v1220 = vadd.f32 %v1129, %v1218
        %v1221 = vstv %s661
        %v1222 = vmul.f32 %v806, %v1221
        %v1223 = vstv %s710
        %v1224 = vmul.f32 %v806, %v1223
        %v1226 = vrot.slane %v1224, 7
        %v1227 = vrot.slane %v1226, 2
        %v1229 = vadd.f32 %v1222, %v1227
        %1230 = vrot.lane.b32.xlu0 %v1092, 47
        %v1231 = vpop.permute.xlu0 %1230
        %v1232 = vrot.slane %v1231, 6
        %v1233 = vsel %vm919, %v1232, %v1231
        %v1235 = vmul.f32 %v1229, %v1233
        %1237 = vrot.lane.b32.xlu0 %v1235, 30
        %v1238 = vpop.permute.xlu0 %1237
        %v1239 = vrot.slane %v1238, 6
        %v1240 = vsel %vm1028, %v1239, %v1238
        %v1242 = vadd.f32 %v1151, %v1240
        %vm1243 = vcmp.ge.s32.totalorder %v615, 0
        %vm1244 = vcmp.ge.s32.totalorder %v616, 0
        %vm1245 = vcmp.lt.s32.totalorder %v615, 16
        %vm1246 = vcmp.lt.s32.totalorder %v616, 16
        %vm1247 = vmand %vm1243, %vm1245
        %vm1248 = vmand %vm1244, %vm1246
        %v1249 = vsel %vm1247, 1, 0
        %v1250 = vsel %vm1248, 1, 0
        %v1251 = vcvt.s32.f32 %v1249
        %v1252 = vcvt.s32.f32 %v1250
        %v1253 = vstv %s620
        %v1254 = vmul.f32 %v727, %v1253
        %v1255 = vstv %s669
        %v1256 = vmul.f32 %v727, %v1255
        %v1258 = vrot.slane %v1256, 7
        %v1259 = vrot.slane %v1258, 2
        %v1261 = vadd.f32 %v1254, %v1259
        %v1264 = vcombine.low %v1251, %v1252
        %v1266 = vunpack.c.l.s4 1983009808
        %v1267 = vunpack.c.0.s8 %v1266
        %v1268 = vlaneseq
        %v1269 = vshrl.u32 %v1268, 7
        %v1270 = vsub.s32 %v1267, %v1269
        %v1271 = vrot.slane %v1264, %v1270
        %1272 = vrot.lane.b32.xlu0 %v1271, 80
        %v1273 = vpop.permute.xlu0 %1272
        %v1274 = vrot.slane %v1273, 6
        %vm1275 = vcmask 654336
        %v1276 = vsel %vm1275, %v1274, %v1273
        %v1278 = vmul.f32 %v1261, %v1276
        %1280 = vrot.lane.b32.xlu0 %v1278, 13
        %v1281 = vpop.permute.xlu0 %1280
        %v1282 = vrot.slane %v1281, 6
        %v1283 = vsel %vm819, %v1282, %v1281
        %v1285 = vadd.f32 %v1174, %v1283
        %v1286 = vstv %s627
        %v1287 = vmul.f32 %v727, %v1286
        %v1288 = vstv %s676
        %v1289 = vmul.f32 %v727, %v1288
        %v1291 = vrot.slane %v1289, 7
        %v1292 = vrot.slane %v1291, 2
        %v1294 = vadd.f32 %v1287, %v1292
        %1295 = vrot.lane.b32.xlu0 %v1271, 96
        %v1296 = vpop.permute.xlu0 %1295
        %v1297 = vrot.slane %v1296, 6
        %vm1298 = vcmask 785408
        %v1299 = vsel %vm1298, %v1297, %v1296
        %v1301 = vmul.f32 %v1294, %v1299
        %1303 = vrot.lane.b32.xlu0 %v1301, 13
        %v1304 = vpop.permute.xlu0 %1303
        %v1305 = vrot.slane %v1304, 6
        %v1306 = vsel %vm819, %v1305, %v1304
        %v1308 = vadd.f32 %v1197, %v1306
        %v1309 = vstv %s634
        %v1310 = vmul.f32 %v727, %v1309
        %v1311 = vstv %s683
        %v1312 = vmul.f32 %v727, %v1311
        %v1314 = vrot.slane %v1312, 7
        %v1315 = vrot.slane %v1314, 2
        %v1317 = vadd.f32 %v1310, %v1315
        %1318 = vrot.lane.b32.xlu0 %v1271, 112
        %v1319 = vpop.permute.xlu0 %1318
        %v1320 = vrot.slane %v1319, 6
        %vm1321 = vcmask 916480
        %v1322 = vsel %vm1321, %v1320, %v1319
        %v1324 = vmul.f32 %v1317, %v1322
        %1326 = vrot.lane.b32.xlu0 %v1324, 13
        %v1327 = vpop.permute.xlu0 %1326
        %v1328 = vrot.slane %v1327, 6
        %v1329 = vsel %vm819, %v1328, %v1327
        %v1331 = vadd.f32 %v1220, %v1329
        %v1332 = vld [vmem:[#allocation2 + $0x2] sm:$0xf]
        %v1333 = vstv %s641
        %v1334 = vmul.f32 %v1332, %v1333
        %v1335 = vstv %s690
        %v1336 = vmul.f32 %v1332, %v1335
        %v1338 = vrot.slane %v1336, 7
        %v1339 = vrot.slane %v1338, 2
        %v1341 = vadd.f32 %v1334, %v1339
        %v1343 = vmul.f32 %v1341, %v1271
        %1345 = vrot.lane.b32.xlu0 %v1343, 77
        %v1346 = vpop.permute.xlu0 %1345
        %v1347 = vrot.slane %v1346, 6
        %v1348 = vsel %vm750, %v1347, %v1346
        %v1350 = vadd.f32 %v1242, %v1348
        %v1351 = vstv %s648
        %v1352 = vmul.f32 %v806, %v1351
        %v1353 = vstv %s697
        %v1354 = vmul.f32 %v806, %v1353
        %v1356 = vrot.slane %v1354, 7
        %v1357 = vrot.slane %v1356, 2
        %v1359 = vadd.f32 %v1352, %v1357
        %1360 = vrot.lane.b32.xlu0 %v1271, 16
        %v1361 = vpop.permute.xlu0 %1360
        %v1362 = vrot.slane %v1361, 6
        %vm1363 = vcmask 130048
        %v1364 = vsel %vm1363, %v1362, %v1361
        %v1366 = vmul.f32 %v1359, %v1364
        %1368 = vrot.lane.b32.xlu0 %v1366, 77
        %v1369 = vpop.permute.xlu0 %1368
        %v1370 = vrot.slane %v1369, 6
        %v1371 = vsel %vm750, %v1370, %v1369
        %v1373 = vadd.f32 %v1285, %v1371
        %v1374 = vstv %s655
        %v1375 = vmul.f32 %v806, %v1374
        %v1376 = vstv %s704
        %v1377 = vmul.f32 %v806, %v1376
        %v1379 = vrot.slane %v1377, 7
        %v1380 = vrot.slane %v1379, 2
        %v1382 = vadd.f32 %v1375, %v1380
        %1383 = vrot.lane.b32.xlu0 %v1271, 32
        %v1384 = vpop.permute.xlu0 %1383
        %v1385 = vrot.slane %v1384, 6
        %v1386 = vsel %vm325, %v1385, %v1384
        %v1388 = vmul.f32 %v1382, %v1386
        %1390 = vrot.lane.b32.xlu0 %v1388, 77
        %v1391 = vpop.permute.xlu0 %1390
        %v1392 = vrot.slane %v1391, 6
        %v1393 = vsel %vm750, %v1392, %v1391
        %v1395 = vadd.f32 %v1308, %v1393
        %v1396 = vstv %s662
        %v1397 = vmul.f32 %v806, %v1396
        %v1398 = vstv %s711
        %v1399 = vmul.f32 %v806, %v1398
        %v1401 = vrot.slane %v1399, 7
        %v1402 = vrot.slane %v1401, 2
        %v1404 = vadd.f32 %v1397, %v1402
        %1405 = vrot.lane.b32.xlu0 %v1271, 48
        %v1406 = vpop.permute.xlu0 %1405
        %v1407 = vrot.slane %v1406, 6
        %vm1408 = vcmask 392192
        %v1409 = vsel %vm1408, %v1407, %v1406
        %v1411 = vmul.f32 %v1404, %v1409
        %1413 = vrot.lane.b32.xlu0 %v1411, 77
        %v1414 = vpop.permute.xlu0 %1413
        %v1415 = vrot.slane %v1414, 6
        %v1416 = vsel %vm750, %v1415, %v1414
        %v1418 = vadd.f32 %v1331, %v1416
        %v1419 = vadd.s32 %v615, 1
        %v1420 = vadd.s32 %v616, 1
        %vm1421 = vcmp.ge.s32.totalorder %v1419, 0
        %vm1422 = vcmp.ge.s32.totalorder %v1420, 0
        %vm1423 = vcmp.lt.s32.totalorder %v1419, 16
        %vm1424 = vcmp.lt.s32.totalorder %v1420, 16
        %vm1425 = vmand %vm1421, %vm1423
        %vm1426 = vmand %vm1422, %vm1424
        %v1427 = vsel %vm1425, 1, 0
        %v1428 = vsel %vm1426, 1, 0
        %v1429 = vcvt.s32.f32 %v1427
        %v1430 = vcvt.s32.f32 %v1428
        %v1431 = vstv %s621
        %v1432 = vmul.f32 %v727, %v1431
        %v1433 = vstv %s670
        %v1434 = vmul.f32 %v727, %v1433
        %v1436 = vrot.slane %v1434, 7
        %v1437 = vrot.slane %v1436, 2
        %v1439 = vadd.f32 %v1432, %v1437
        %v1442 = vcombine.low %v1429, %v1430
        %v1444 = vunpack.c.l.s4 1983009808
        %v1445 = vunpack.c.0.s8 %v1444
        %v1446 = vlaneseq
        %v1447 = vshrl.u32 %v1446, 7
        %v1448 = vsub.s32 %v1445, %v1447
        %v1449 = vrot.slane %v1442, %v1448
        %1450 = vrot.lane.b32.xlu0 %v1449, 81
        %v1451 = vpop.permute.xlu0 %1450
        %v1452 = vrot.slane %v1451, 6
        %vm1453 = vcmask 662528
        %v1454 = vsel %vm1453, %v1452, %v1451
        %v1456 = vmul.f32 %v1439, %v1454
        %1458 = vrot.lane.b32.xlu0 %v1456, 124
        %v1459 = vpop.permute.xlu0 %1458
        %v1460 = vrot.slane %v1459, 2
        %vm1461 = vcmask 1014784
        %v1462 = vsel %vm1461, %v1459, %v1460
        %v1464 = vadd.f32 %v1350, %v1462
        %v1465 = vstv %s628
        %v1466 = vmul.f32 %v727, %v1465
        %v1467 = vstv %s677
        %v1468 = vmul.f32 %v727, %v1467
        %v1470 = vrot.slane %v1468, 7
        %v1471 = vrot.slane %v1470, 2
        %v1473 = vadd.f32 %v1466, %v1471
        %1474 = vrot.lane.b32.xlu0 %v1449, 97
        %v1475 = vpop.permute.xlu0 %1474
        %v1476 = vrot.slane %v1475, 6
        %vm1477 = vcmask 793600
        %v1478 = vsel %vm1477, %v1476, %v1475
        %v1480 = vmul.f32 %v1473, %v1478
        %1482 = vrot.lane.b32.xlu0 %v1480, 124
        %v1483 = vpop.permute.xlu0 %1482
        %v1484 = vrot.slane %v1483, 2
        %v1485 = vsel %vm1461, %v1483, %v1484
        %v1487 = vadd.f32 %v1373, %v1485
        %v1488 = vstv %s635
        %v1489 = vmul.f32 %v727, %v1488
        %v1490 = vstv %s684
        %v1491 = vmul.f32 %v727, %v1490
        %v1493 = vrot.slane %v1491, 7
        %v1494 = vrot.slane %v1493, 2
        %v1496 = vadd.f32 %v1489, %v1494
        %1497 = vrot.lane.b32.xlu0 %v1449, 113
        %v1498 = vpop.permute.xlu0 %1497
        %v1499 = vrot.slane %v1498, 6
        %vm1500 = vcmask 924672
        %v1501 = vsel %vm1500, %v1499, %v1498
        %v1503 = vmul.f32 %v1496, %v1501
        %1505 = vrot.lane.b32.xlu0 %v1503, 124
        %v1506 = vpop.permute.xlu0 %1505
        %v1507 = vrot.slane %v1506, 2
        %v1508 = vsel %vm1461, %v1506, %v1507
        %v1510 = vadd.f32 %v1395, %v1508
        %v1511 = vstv %s642
        %v1512 = vmul.f32 %v806, %v1511
        %v1513 = vstv %s691
        %v1514 = vmul.f32 %v806, %v1513
        %v1516 = vrot.slane %v1514, 7
        %v1517 = vrot.slane %v1516, 2
        %v1519 = vadd.f32 %v1512, %v1517
        %1520 = vrot.lane.b32.xlu0 %v1449, 1
        %v1521 = vpop.permute.xlu0 %1520
        %v1522 = vrot.slane %v1521, 6
        %vm1523 = vcmask 7168
        %v1524 = vsel %vm1523, %v1522, %v1521
        %v1526 = vmul.f32 %v1519, %v1524
        %1528 = vrot.lane.b32.xlu0 %v1526, 124
        %v1529 = vpop.permute.xlu0 %1528
        %v1530 = vrot.slane %v1529, 6
        %v1531 = vsel %vm1461, %v1530, %v1529
        %v1533 = vadd.f32 %v1418, %v1531
        %v1534 = vstv %s649
        %v1535 = vmul.f32 %v806, %v1534
        %v1536 = vstv %s698
        %v1537 = vmul.f32 %v806, %v1536
        %v1539 = vrot.slane %v1537, 7
        %v1540 = vrot.slane %v1539, 2
        %v1542 = vadd.f32 %v1535, %v1540
        %1543 = vrot.lane.b32.xlu0 %v1449, 17
        %v1544 = vpop.permute.xlu0 %1543
        %v1545 = vrot.slane %v1544, 6
        %vm1546 = vcmask 138240
        %v1547 = vsel %vm1546, %v1545, %v1544
        %v1549 = vmul.f32 %v1542, %v1547
        %1551 = vrot.lane.b32.xlu0 %v1549, 60
        %v1552 = vpop.permute.xlu0 %1551
        %v1553 = vrot.slane %v1552, 6
        %vm1554 = vcmask 490496
        %v1555 = vsel %vm1554, %v1553, %v1552
        %v1557 = vadd.f32 %v1464, %v1555
        %v1558 = vstv %s656
        %v1559 = vmul.f32 %v806, %v1558
        %v1560 = vstv %s705
        %v1561 = vmul.f32 %v806, %v1560
        %v1563 = vrot.slane %v1561, 7
        %v1564 = vrot.slane %v1563, 2
        %v1566 = vadd.f32 %v1559, %v1564
        %1567 = vrot.lane.b32.xlu0 %v1449, 33
        %v1568 = vpop.permute.xlu0 %1567
        %v1569 = vrot.slane %v1568, 6
        %vm1570 = vcmask 269312
        %v1571 = vsel %vm1570, %v1569, %v1568
        %v1573 = vmul.f32 %v1566, %v1571
        %1575 = vrot.lane.b32.xlu0 %v1573, 60
        %v1576 = vpop.permute.xlu0 %1575
        %v1577 = vrot.slane %v1576, 6
        %v1578 = vsel %vm1554, %v1577, %v1576
        %v1580 = vadd.f32 %v1487, %v1578
        %v1581 = vstv %s663
        %v1582 = vmul.f32 %v806, %v1581
        %v1583 = vstv %s712
        %v1584 = vmul.f32 %v806, %v1583
        %v1586 = vrot.slane %v1584, 7
        %v1587 = vrot.slane %v1586, 2
        %v1589 = vadd.f32 %v1582, %v1587
        %1590 = vrot.lane.b32.xlu0 %v1449, 49
        %v1591 = vpop.permute.xlu0 %1590
        %v1592 = vrot.slane %v1591, 6
        %vm1593 = vcmask 400384
        %v1594 = vsel %vm1593, %v1592, %v1591
        %v1596 = vmul.f32 %v1589, %v1594
        %1598 = vrot.lane.b32.xlu0 %v1596, 60
        %v1599 = vpop.permute.xlu0 %1598
        %v1600 = vrot.slane %v1599, 6
        %v1601 = vsel %vm1554, %v1600, %v1599
        %v1603 = vadd.f32 %v1510, %v1601
        %v1604 = vadd.s32 %v615, 2
        %v1605 = vadd.s32 %v616, 2
        %vm1606 = vcmp.ge.s32.totalorder %v1604, 0
        %vm1607 = vcmp.ge.s32.totalorder %v1605, 0
        %vm1608 = vcmp.lt.s32.totalorder %v1604, 16
        %vm1609 = vcmp.lt.s32.totalorder %v1605, 16
        %vm1610 = vmand %vm1606, %vm1608
        %vm1611 = vmand %vm1607, %vm1609
        %v1612 = vsel %vm1610, 1, 0
        %v1613 = vsel %vm1611, 1, 0
        %v1614 = vcvt.s32.f32 %v1612
        %v1615 = vcvt.s32.f32 %v1613
        %v1616 = vstv %s622
        %v1617 = vmul.f32 %v727, %v1616
        %v1618 = vstv %s671
        %v1619 = vmul.f32 %v727, %v1618
        %v1621 = vrot.slane %v1619, 7
        %v1622 = vrot.slane %v1621, 2
        %v1624 = vadd.f32 %v1617, %v1622
        %v1627 = vcombine.low %v1614, %v1615
        %v1629 = vunpack.c.l.s4 1983009808
        %v1630 = vunpack.c.0.s8 %v1629
        %v1631 = vlaneseq
        %v1632 = vshrl.u32 %v1631, 7
        %v1633 = vsub.s32 %v1630, %v1632
        %v1634 = vrot.slane %v1627, %v1633
        %1635 = vrot.lane.b32.xlu0 %v1634, 82
        %v1636 = vpop.permute.xlu0 %1635
        %v1637 = vrot.slane %v1636, 6
        %vm1638 = vcmask 670720
        %v1639 = vsel %vm1638, %v1637, %v1636
        %v1641 = vmul.f32 %v1624, %v1639
        %1643 = vrot.lane.b32.xlu0 %v1641, 43
        %v1644 = vpop.permute.xlu0 %1643
        %v1645 = vrot.slane %v1644, 6
        %vm1646 = vcmask 351232
        %v1647 = vsel %vm1646, %v1645, %v1644
        %v1649 = vadd.f32 %v1533, %v1647
        %v1650 = vstv %s629
        %v1651 = vmul.f32 %v727, %v1650
        %v1652 = vstv %s678
        %v1653 = vmul.f32 %v727, %v1652
        %v1655 = vrot.slane %v1653, 7
        %v1656 = vrot.slane %v1655, 2
        %v1658 = vadd.f32 %v1651, %v1656
        %1659 = vrot.lane.b32.xlu0 %v1634, 98
        %v1660 = vpop.permute.xlu0 %1659
        %v1661 = vrot.slane %v1660, 6
        %vm1662 = vcmask 801792
        %v1663 = vsel %vm1662, %v1661, %v1660
        %v1665 = vmul.f32 %v1658, %v1663
        %1667 = vrot.lane.b32.xlu0 %v1665, 107
        %v1668 = vpop.permute.xlu0 %1667
        %v1669 = vrot.slane %v1668, 2
        %vm1670 = vcmask 875520
        %v1671 = vsel %vm1670, %v1668, %v1669
        %v1673 = vadd.f32 %v1557, %v1671
        %v1674 = vstv %s636
        %v1675 = vmul.f32 %v727, %v1674
        %v1676 = vstv %s685
        %v1677 = vmul.f32 %v727, %v1676
        %v1679 = vrot.slane %v1677, 7
        %v1680 = vrot.slane %v1679, 2
        %v1682 = vadd.f32 %v1675, %v1680
        %1683 = vrot.lane.b32.xlu0 %v1634, 114
        %v1684 = vpop.permute.xlu0 %1683
        %v1685 = vrot.slane %v1684, 6
        %vm1686 = vcmask 932864
        %v1687 = vsel %vm1686, %v1685, %v1684
        %v1689 = vmul.f32 %v1682, %v1687
        %1691 = vrot.lane.b32.xlu0 %v1689, 107
        %v1692 = vpop.permute.xlu0 %1691
        %v1693 = vrot.slane %v1692, 2
        %v1694 = vsel %vm1670, %v1692, %v1693
        %v1696 = vadd.f32 %v1580, %v1694
        %v1697 = vstv %s643
        %v1698 = vmul.f32 %v806, %v1697
        %v1699 = vstv %s692
        %v1700 = vmul.f32 %v806, %v1699
        %v1702 = vrot.slane %v1700, 7
        %v1703 = vrot.slane %v1702, 2
        %v1705 = vadd.f32 %v1698, %v1703
        %1706 = vrot.lane.b32.xlu0 %v1634, 2
        %v1707 = vpop.permute.xlu0 %1706
        %v1708 = vrot.slane %v1707, 6
        %vm1709 = vcmask 15360
        %v1710 = vsel %vm1709, %v1708, %v1707
        %v1712 = vmul.f32 %v1705, %v1710
        %1714 = vrot.lane.b32.xlu0 %v1712, 107
        %v1715 = vpop.permute.xlu0 %1714
        %v1716 = vrot.slane %v1715, 6
        %v1717 = vsel %vm1670, %v1716, %v1715
        %v1719 = vadd.f32 %v1603, %v1717
        %v1720 = vstv %s650
        %v1721 = vmul.f32 %v806, %v1720
        %v1722 = vstv %s699
        %v1723 = vmul.f32 %v806, %v1722
        %v1725 = vrot.slane %v1723, 7
        %v1726 = vrot.slane %v1725, 2
        %v1728 = vadd.f32 %v1721, %v1726
        %1729 = vrot.lane.b32.xlu0 %v1634, 18
        %v1730 = vpop.permute.xlu0 %1729
        %v1731 = vrot.slane %v1730, 6
        %vm1732 = vcmask 146432
        %v1733 = vsel %vm1732, %v1731, %v1730
        %v1735 = vmul.f32 %v1728, %v1733
        %1737 = vrot.lane.b32.xlu0 %v1735, 107
        %v1738 = vpop.permute.xlu0 %1737
        %v1739 = vrot.slane %v1738, 6
        %v1740 = vsel %vm1670, %v1739, %v1738
        %v1742 = vadd.f32 %v1649, %v1740
        %v1743 = vstv %s657
        %v1744 = vmul.f32 %v806, %v1743
        %v1745 = vstv %s706
        %v1746 = vmul.f32 %v806, %v1745
        %v1748 = vrot.slane %v1746, 7
        %v1749 = vrot.slane %v1748, 2
        %v1751 = vadd.f32 %v1744, %v1749
        %1752 = vrot.lane.b32.xlu0 %v1634, 34
        %v1753 = vpop.permute.xlu0 %1752
        %v1754 = vrot.slane %v1753, 6
        %vm1755 = vcmask 277504
        %v1756 = vsel %vm1755, %v1754, %v1753
        %v1758 = vmul.f32 %v1751, %v1756
        %1760 = vrot.lane.b32.xlu0 %v1758, 43
        %v1761 = vpop.permute.xlu0 %1760
        %v1762 = vrot.slane %v1761, 6
        %v1763 = vsel %vm1646, %v1762, %v1761
        %v1765 = vadd.f32 %v1673, %v1763
        %v1766 = vstv %s664
        %v1767 = vmul.f32 %v806, %v1766
        %v1768 = vstv %s713
        %v1769 = vmul.f32 %v806, %v1768
        %v1771 = vrot.slane %v1769, 7
        %v1772 = vrot.slane %v1771, 2
        %v1774 = vadd.f32 %v1767, %v1772
        %1775 = vrot.lane.b32.xlu0 %v1634, 50
        %v1776 = vpop.permute.xlu0 %1775
        %v1777 = vrot.slane %v1776, 6
        %vm1778 = vcmask 408576
        %v1779 = vsel %vm1778, %v1777, %v1776
        %v1781 = vmul.f32 %v1774, %v1779
        %1783 = vrot.lane.b32.xlu0 %v1781, 43
        %v1784 = vpop.permute.xlu0 %1783
        %v1785 = vrot.slane %v1784, 6
        %v1786 = vsel %vm1646, %v1785, %v1784
        %v1788 = vadd.f32 %v1696, %v1786
        %v1789 = vadd.s32 %v615, 3
        %v1790 = vadd.s32 %v616, 3
        %vm1791 = vcmp.ge.s32.totalorder %v1789, 0
        %vm1792 = vcmp.ge.s32.totalorder %v1790, 0
        %vm1793 = vcmp.lt.s32.totalorder %v1789, 16
        %vm1794 = vcmp.lt.s32.totalorder %v1790, 16
        %vm1795 = vmand %vm1791, %vm1793
        %vm1796 = vmand %vm1792, %vm1794
        %v1797 = vsel %vm1795, 1, 0
        %v1798 = vsel %vm1796, 1, 0
        %v1799 = vcvt.s32.f32 %v1797
        %v1800 = vcvt.s32.f32 %v1798
        %v1801 = vstv %s623
        %v1802 = vmul.f32 %v727, %v1801
        %v1803 = vstv %s672
        %v1804 = vmul.f32 %v727, %v1803
        %v1806 = vrot.slane %v1804, 7
        %v1807 = vrot.slane %v1806, 2
        %v1809 = vadd.f32 %v1802, %v1807
        %v1812 = vcombine.low %v1799, %v1800
        %v1814 = vunpack.c.l.s4 1983009808
        %v1815 = vunpack.c.0.s8 %v1814
        %v1816 = vlaneseq
        %v1817 = vshrl.u32 %v1816, 7
        %v1818 = vsub.s32 %v1815, %v1817
        %v1819 = vrot.slane %v1812, %v1818
        %1820 = vrot.lane.b32.xlu0 %v1819, 83
        %v1821 = vpop.permute.xlu0 %1820
        %v1822 = vrot.slane %v1821, 6
        %vm1823 = vcmask 678912
        %v1824 = vsel %vm1823, %v1822, %v1821
        %v1826 = vmul.f32 %v1809, %v1824
        %1828 = vrot.lane.b32.xlu0 %v1826, 26
        %v1829 = vpop.permute.xlu0 %1828
        %v1830 = vrot.slane %v1829, 6
        %vm1831 = vcmask 211968
        %v1832 = vsel %vm1831, %v1830, %v1829
        %v1834 = vadd.f32 %v1719, %v1832
        %v1835 = vstv %s630
        %v1836 = vmul.f32 %v727, %v1835
        %v1837 = vstv %s679
        %v1838 = vmul.f32 %v727, %v1837
        %v1840 = vrot.slane %v1838, 7
        %v1841 = vrot.slane %v1840, 2
        %v1843 = vadd.f32 %v1836, %v1841
        %1844 = vrot.lane.b32.xlu0 %v1819, 99
        %v1845 = vpop.permute.xlu0 %1844
        %v1846 = vrot.slane %v1845, 6
        %vm1847 = vcmask 809984
        %v1848 = vsel %vm1847, %v1846, %v1845
        %v1850 = vmul.f32 %v1843, %v1848
        %1852 = vrot.lane.b32.xlu0 %v1850, 26
        %v1853 = vpop.permute.xlu0 %1852
        %v1854 = vrot.slane %v1853, 6
        %v1855 = vsel %vm1831, %v1854, %v1853
        %v1857 = vadd.f32 %v1742, %v1855
        %v1858 = vstv %s637
        %v1859 = vmul.f32 %v727, %v1858
        %v1860 = vstv %s686
        %v1861 = vmul.f32 %v727, %v1860
        %v1863 = vrot.slane %v1861, 7
        %v1864 = vrot.slane %v1863, 2
        %v1866 = vadd.f32 %v1859, %v1864
        %1867 = vrot.lane.b32.xlu0 %v1819, 115
        %v1868 = vpop.permute.xlu0 %1867
        %v1869 = vrot.slane %v1868, 6
        %vm1870 = vcmask 941056
        %v1871 = vsel %vm1870, %v1869, %v1868
        %v1873 = vmul.f32 %v1866, %v1871
        %1875 = vrot.lane.b32.xlu0 %v1873, 90
        %v1876 = vpop.permute.xlu0 %1875
        %v1877 = vrot.slane %v1876, 2
        %vm1878 = vcmask 736256
        %v1879 = vsel %vm1878, %v1876, %v1877
        %v1881 = vadd.f32 %v1765, %v1879
        %v1882 = vstv %s644
        %v1883 = vmul.f32 %v806, %v1882
        %v1884 = vstv %s693
        %v1885 = vmul.f32 %v806, %v1884
        %v1887 = vrot.slane %v1885, 7
        %v1888 = vrot.slane %v1887, 2
        %v1890 = vadd.f32 %v1883, %v1888
        %1891 = vrot.lane.b32.xlu0 %v1819, 3
        %v1892 = vpop.permute.xlu0 %1891
        %v1893 = vrot.slane %v1892, 6
        %vm1894 = vcmask 23552
        %v1895 = vsel %vm1894, %v1893, %v1892
        %v1897 = vmul.f32 %v1890, %v1895
        %1899 = vrot.lane.b32.xlu0 %v1897, 90
        %v1900 = vpop.permute.xlu0 %1899
        %v1901 = vrot.slane %v1900, 6
        %v1902 = vsel %vm1878, %v1901, %v1900
        %v1904 = vadd.f32 %v1788, %v1902
        %v1905 = vstv %s651
        %v1906 = vmul.f32 %v806, %v1905
        %v1907 = vstv %s700
        %v1908 = vmul.f32 %v806, %v1907
        %v1910 = vrot.slane %v1908, 7
        %v1911 = vrot.slane %v1910, 2
        %v1913 = vadd.f32 %v1906, %v1911
        %1914 = vrot.lane.b32.xlu0 %v1819, 19
        %v1915 = vpop.permute.xlu0 %1914
        %v1916 = vrot.slane %v1915, 6
        %vm1917 = vcmask 154624
        %v1918 = vsel %vm1917, %v1916, %v1915
        %v1920 = vmul.f32 %v1913, %v1918
        %1922 = vrot.lane.b32.xlu0 %v1920, 90
        %v1923 = vpop.permute.xlu0 %1922
        %v1924 = vrot.slane %v1923, 6
        %v1925 = vsel %vm1878, %v1924, %v1923
        %v1927 = vadd.f32 %v1834, %v1925
        %v1928 = vstv %s658
        %v1929 = vmul.f32 %v806, %v1928
        %v1930 = vstv %s707
        %v1931 = vmul.f32 %v806, %v1930
        %v1933 = vrot.slane %v1931, 7
        %v1934 = vrot.slane %v1933, 2
        %v1936 = vadd.f32 %v1929, %v1934
        %1937 = vrot.lane.b32.xlu0 %v1819, 35
        %v1938 = vpop.permute.xlu0 %1937
        %v1939 = vrot.slane %v1938, 6
        %vm1940 = vcmask 285696
        %v1941 = vsel %vm1940, %v1939, %v1938
        %v1943 = vmul.f32 %v1936, %v1941
        %1945 = vrot.lane.b32.xlu0 %v1943, 90
        %v1946 = vpop.permute.xlu0 %1945
        %v1947 = vrot.slane %v1946, 6
        %v1948 = vsel %vm1878, %v1947, %v1946
        %v1950 = vadd.f32 %v1857, %v1948
        %v1951 = vstv %s665
        %v1952 = vmul.f32 %v806, %v1951
        %v1953 = vstv %s714
        %v1954 = vmul.f32 %v806, %v1953
        %v1956 = vrot.slane %v1954, 7
        %v1957 = vrot.slane %v1956, 2
        %v1959 = vadd.f32 %v1952, %v1957
        %1960 = vrot.lane.b32.xlu0 %v1819, 51
        %v1961 = vpop.permute.xlu0 %1960
        %v1962 = vrot.slane %v1961, 6
        %vm1963 = vcmask 416768
        %v1964 = vsel %vm1963, %v1962, %v1961
        %v1966 = vmul.f32 %v1959, %v1964
        %1968 = vrot.lane.b32.xlu0 %v1966, 26
        %v1969 = vpop.permute.xlu0 %1968
        %v1970 = vrot.slane %v1969, 6
        %v1971 = vsel %vm1831, %v1970, %v1969
        %v1973 = vadd.f32 %v1881, %v1971
        %1975 = vrot.lane.b32.xlu0 %v1904, 112
        %v1976 = vpop.permute.xlu0 %1975
        %v1977 = vrot.slane %v1976, 2
        %v1978 = vsel %vm1321, %v1976, %v1977
        %v1980 = vadd.f32 %v1973, %v1978
        %1982 = vrot.lane.b32.xlu0 %v1927, 96
        %v1983 = vpop.permute.xlu0 %1982
        %v1984 = vrot.slane %v1983, 2
        %v1985 = vsel %vm1298, %v1983, %v1984
        %v1987 = vadd.f32 %v1980, %v1985
        %1989 = vrot.lane.b32.xlu0 %v1950, 80
        %v1990 = vpop.permute.xlu0 %1989
        %v1991 = vrot.slane %v1990, 2
        %v1992 = vsel %vm1275, %v1990, %v1991
        %v1994 = vadd.f32 %v1987, %v1992
        %v1995 = vxor.u32 %v1994, 2147483648
        %v1996 = vmul.f32 %v1995, 1.442695
        %v1997 = vpow.pop %v1996
        %v1998 = vadd.f32 %v1997, 1.0
        %v1999 = vrcp.pop %v1998
        %v2000 = vmul.f32 1.0, %v1999
        %v2002 = vlaneseq
        %v2003 = vshrl.u32 %v2002, 7
        %v2004 = vsub.s32 0, %v2003
        %v2005 = vrot.slane %v2000, %v2004
        %v2006 = vlaneseq
        %v2007 = vshrl.u32 %v2006, 7
        %v2008 = vsub.s32 2, %v2007
        %v2009 = vrot.slane %v2000, %v2008
        %v2010 = vlaneseq
        %v2011 = vshrl.u32 %v2010, 7
        %v2012 = vsub.s32 4, %v2011
        %v2013 = vrot.slane %v2000, %v2012
        %v2017 = vlaneseq
        %v2018 = vshrl.u32 %v2017, 7
        %v2019 = vsub.s32 0, %v2018
        %v2020 = vrot.slane %v2005, %v2019
        %v2021 = vlaneseq
        %v2022 = vshrl.u32 %v2021, 7
        %v2023 = vsub.s32 0, %v2022
        %v2024 = vrot.slane %v2009, %v2023
        %v2025 = vlaneseq
        %v2026 = vshrl.u32 %v2025, 7
        %v2027 = vsub.s32 0, %v2026
        %v2028 = vrot.slane %v2013, %v2027
        %2032 = vrot.lane.b32.xlu0 %v2020, 51
        %v2033 = vpop.permute.xlu0 %2032
        %2034 = vrot.lane.b32.xlu0 %v2024, 51
        %v2035 = vpop.permute.xlu0 %2034
        %2036 = vrot.lane.b32.xlu0 %v2028, 51
        %v2037 = vpop.permute.xlu0 %2036
        %v2038 = vsel %vm1963, %v2033, %v2035
        %v2039 = vsel %vm1963, %v2035, %v2037
        %v2042 = vmul.f32 %v499, %v2038
        %v2043 = vmul.f32 %v500, %v2039
        %v2044 = vmul.f32 %v501, %v2038
        %v2045 = vmul.f32 %v502, %v2039
        %v2046 = vmul.f32 %v503, %v2038
        %v2047 = vmul.f32 %v504, %v2039
        %v2048 = vmul.f32 %v505, %v2038
        %v2049 = vmul.f32 %v506, %v2039
        %2050 = vst [vmem:[%s204] sm:$0xff] %v2042
        %2051 = vst [vmem:[%s204 + $0x8] sm:$0xff] %v2043
        %2052 = vst [vmem:[%s204 + $0x10] sm:$0xff] %v2044
        %2053 = vst [vmem:[%s204 + $0x18] sm:$0xff] %v2045
        %2054 = vst [vmem:[%s204 + $0x20] sm:$0xff] %v2046
        %2055 = vst [vmem:[%s204 + $0x28] sm:$0xff] %v2047
        %2056 = vst [vmem:[%s204 + $0x30] sm:$0xff] %v2048
        %2057 = vst [vmem:[%s204 + $0x38] sm:$0xff] %v2049
        %s2058 = sand.u32 %s116, 1
        %s2059 = scalar_lea.sflag [#allocation4], %s2058
        %s2060 = sand.u32 %s116, 1
        %s2061 = smul.addr %s2060, 64
        %s2062 = scalar_lea.vmem [#allocation6], %s2061
        // Predicated region
        $region41: #{tpu_custom_call.1} parent=35 // pred_check
          %p2063 = pneg %p126
        $region42: #{tpu_custom_call.1} parent=35 // pred_check_branch
          %2065 = sbr.rel (%p2063) target = $region44
        $region43: #{tpu_custom_call.1} parent=35 // pred_region
          %s2067 = ssub.s32 1024, 1024
          %2068 = vsyncadd %s2059, %s2067
          %s2069 = smul.addr %s19, 8
          %s2070 = smul.addr %s2069, 128
          %s2071 = scalar_lea.hbm %s4, %s2070
          %s2072 = sshll.u32 %s2062, 4
          %s2073 = int_to_ptr.vmem [resolvable:$true] %s2072
          %2078 = dma.vmem_to_hbm [thread:$0]  %s2073, 1024, %s2071, %s2059, 256, 256, 16
        $region44: #{tpu_custom_call.1} parent=35 // pred_fallthru
          _
      $region36: #{tpu_custom_call.1} parent=5 // pred_fallthru
        _
      %p2079 = scmp.le.s32.totalorder 2, %s14
      // Predicated region
      $region45: #{tpu_custom_call.1} parent=5 // pred_check
        %p2080 = pneg %p2079
      $region46: #{tpu_custom_call.1} parent=5 // pred_check_branch
        %2082 = sbr.rel (%p2080) target = $region48
      $region47: #{tpu_custom_call.1} parent=5 // pred_region
        %s2083 = ssub.s32 %s14, 2
        // Predicated region
        $region49: #{tpu_custom_call.1} parent=47 // pred_check
          %p2084 = pneg %p132
        $region50: #{tpu_custom_call.1} parent=47 // pred_check_branch
          %2086 = sbr.rel (%p2084) target = $region52
        $region51: #{tpu_custom_call.1} parent=47 // pred_region
          %s2087 = sand.u32 %s117, 1
          %s2088 = scalar_lea.sflag [#allocation4], %s2087
          %s2089 = sand.u32 %s117, 1
          %s2090 = smul.addr %s2089, 64
          %s2091 = scalar_lea.vmem [#allocation6], %s2090
          %2092 = dma.done %s2088, 1024
        $region52: #{tpu_custom_call.1} parent=47 // pred_fallthru
          _
      $region48: #{tpu_custom_call.1} parent=5 // pred_fallthru
        _
    $region6: #{tpu_custom_call.1} parent=1 // loop_footer
      %s18 = sadd.s32 1, %s14
    $region7: #{tpu_custom_call.1} parent=1 // loop_footer_branch
      %13 = sbr.rel target = $region3
    $region8: #{tpu_custom_call.1} parent=1 // loop_exit
      _
    %2093 = vsyncpa [#allocation4], 1
    %s2094 = scalar_lea.sflag [#allocation4], 1
    %2095 = vsyncpa %s2094, 1
    %2096 = vsyncpa [#allocation5], 1
    %s2097 = scalar_lea.sflag [#allocation5], 1
    %2098 = vsyncpa %s2097, 1

</llo_original>
